<compile_context>
chip_gen: v6e
topology: v6e:2x2x1
jax: 0.10.0
libtpu: 0.0.40
codegen_flags: <defaults>
</compile_context>

<pallas_src>
import functools

import jax
import jax.numpy as jnp
from jax.experimental import pallas as pl
from jax.experimental.pallas import tpu as pltpu


def graph_triple_conv_kernel(
    s_idx_ref, o_idx_ref, pred_ref, obj_ref, inv_cnt_ref,
    w1s_ref, w1p_ref, w1o_ref, b1_ref,
    w2s_ref, w2p_ref, w2o_ref, b2s_ref, b2p_ref, b2o_ref,
    w3_ref, b3_ref, w4_ref, b4_ref,
    new_obj_ref, new_p_ref,
    proj_s_ref, proj_o_ref, pooled_ref):
  t = pl.program_id(0)
  n_t = pl.num_programs(0)
  tT = pred_ref.shape[0]
  O = obj_ref.shape[0]

  # --- once: project objects through the s/o slices of W1, zero the accumulator.
  @pl.when(t == 0)
  def _init():
    obj = obj_ref[...]
    proj_s_ref[...] = jnp.dot(obj, w1s_ref[...],
                              preferred_element_type=jnp.float32)
    proj_o_ref[...] = jnp.dot(obj, w1o_ref[...],
                              preferred_element_type=jnp.float32)
    pooled_ref[...] = jnp.zeros_like(pooled_ref)

  # --- build one-hot gather/scatter matrices in-kernel from the edge indices.
  # Padded edges carry index -1 -> all-zero rows (contribute nothing to pooling).
  lane = jax.lax.broadcasted_iota(jnp.int32, (tT, O), 1)
  s_oh = (lane == s_idx_ref[...]).astype(jnp.float32)      # (tT, O)
  o_oh = (lane == o_idx_ref[...]).astype(jnp.float32)      # (tT, O)

  # --- net1 layer 1 fused with the edge gather (no lane-axis concat of [s|p|o]).
  h1 = (jnp.dot(s_oh, proj_s_ref[...], preferred_element_type=jnp.float32)
        + jnp.dot(o_oh, proj_o_ref[...], preferred_element_type=jnp.float32)
        + jnp.dot(pred_ref[...], w1p_ref[...],
                  preferred_element_type=jnp.float32)
        + b1_ref[...])
  h1 = jnp.maximum(h1, 0.0)                                 # (tT, H)

  # --- net1 layer 2, split column-wise -> three lane-dense results.
  new_s = jnp.maximum(
      jnp.dot(h1, w2s_ref[...], preferred_element_type=jnp.float32)
      + b2s_ref[...], 0.0)                                  # (tT, H)
  new_p = jnp.maximum(
      jnp.dot(h1, w2p_ref[...], preferred_element_type=jnp.float32)
      + b2p_ref[...], 0.0)                                  # (tT, Dout)
  new_o = jnp.maximum(
      jnp.dot(h1, w2o_ref[...], preferred_element_type=jnp.float32)
      + b2o_ref[...], 0.0)                                  # (tT, H)

  new_p_ref[...] = new_p                                    # streamed output tile

  # --- scatter_add over objects: transposed contraction (no explicit transpose).
  dn = (((0,), (0,)), ((), ()))                             # contract edge axis
  pooled_ref[...] += (
      jax.lax.dot_general(s_oh, new_s, dn, preferred_element_type=jnp.float32)
      + jax.lax.dot_general(o_oh, new_o, dn, preferred_element_type=jnp.float32))

  # --- epilogue: avg pooling scale + net2, written once.
  @pl.when(t == n_t - 1)
  def _epilogue():
    pooled = pooled_ref[...] * inv_cnt_ref[...]             # (O, H)
    h2 = jnp.maximum(
        jnp.dot(pooled, w3_ref[...], preferred_element_type=jnp.float32)
        + b3_ref[...], 0.0)
    new_obj = (jnp.dot(h2, w4_ref[...], preferred_element_type=jnp.float32)
               + b4_ref[...])
    new_obj_ref[...] = jnp.maximum(new_obj, 0.0)


def graph_triple_conv(obj_vecs, pred_vecs, edges, params, pooling="avg",
                      edge_tile=32):
  """obj_vecs: (O, Din) f32, pred_vecs: (T, Din) f32, edges: (T, 2) int32."""
  assert edge_tile % 8 == 0, "edge tile must be a multiple of 8 sublanes"
  O, Din = obj_vecs.shape
  T = pred_vecs.shape[0]
  (w1s, w1p, w1o, b1, w2s, w2p, w2o, b2s, b2p, b2o, w3, b3, w4, b4) = params
  H = w1s.shape[1]
  Dout = w4.shape[1]

  s_idx = edges[:, 0].astype(jnp.int32)
  o_idx = edges[:, 1].astype(jnp.int32)

  # Pooling scale precomputed outside the kernel (tiny XLA work).
  if pooling == "avg":
    counts = (jnp.zeros((O,), jnp.float32)
              .at[s_idx].add(1.0).at[o_idx].add(1.0))
    inv_cnt = (1.0 / jnp.maximum(counts, 1.0))[:, None]      # (O, 1)
  else:  # 'sum'
    inv_cnt = jnp.ones((O, 1), jnp.float32)

  # Pad T to a multiple of the edge tile; padded edges get index -1 so their
  # one-hot rows are all-zero and never touch the pooled accumulator.
  tT = edge_tile
  n_t = pl.cdiv(T, tT)
  T_pad = n_t * tT
  pad = T_pad - T
  if pad:
    pred_vecs = jnp.pad(pred_vecs, ((0, pad), (0, 0)))
    s_idx = jnp.pad(s_idx, (0, pad), constant_values=-1)
    o_idx = jnp.pad(o_idx, (0, pad), constant_values=-1)
  s_col = s_idx[:, None]                                     # (T_pad, 1) int32
  o_col = o_idx[:, None]

  def resident(a):
    nd = a.ndim
    return pl.BlockSpec(a.shape, lambda t, nd=nd: (0,) * nd)

  in_specs = [
      pl.BlockSpec((tT, 1), lambda t: (t, 0)),               # s_idx tile
      pl.BlockSpec((tT, 1), lambda t: (t, 0)),               # o_idx tile
      pl.BlockSpec((tT, Din), lambda t: (t, 0)),             # pred tile
      resident(obj_vecs), resident(inv_cnt),
      resident(w1s), resident(w1p), resident(w1o), resident(b1),
      resident(w2s), resident(w2p), resident(w2o),
      resident(b2s), resident(b2p), resident(b2o),
      resident(w3), resident(b3), resident(w4), resident(b4),
  ]
  out_specs = (
      pl.BlockSpec((O, Dout), lambda t: (0, 0)),             # new_obj (epilogue)
      pl.BlockSpec((tT, Dout), lambda t: (t, 0)),            # new_p tiles
  )
  scratch_shapes = [
      pltpu.VMEM((O, H), jnp.float32),                       # proj_s
      pltpu.VMEM((O, H), jnp.float32),                       # proj_o
      pltpu.VMEM((O, H), jnp.float32),                       # pooled accumulator
  ]

  new_obj, new_p = pl.pallas_call(
      graph_triple_conv_kernel,
      out_shape=(jax.ShapeDtypeStruct((O, Dout), jnp.float32),
                 jax.ShapeDtypeStruct((T_pad, Dout), jnp.float32)),
      grid=(n_t,),
      in_specs=in_specs,
      out_specs=out_specs,
      scratch_shapes=scratch_shapes,
      compiler_params=pltpu.CompilerParams(
          dimension_semantics=("arbitrary",),                # T axis is a reduction
          vmem_limit_bytes=32 * 1024 * 1024),
  )(s_col, o_col, pred_vecs, obj_vecs, inv_cnt,
    w1s, w1p, w1o, b1, w2s, w2p, w2o, b2s, b2p, b2o, w3, b3, w4, b4)

  return new_obj, new_p[:T]


def init_params(key, din, hidden, dout):
  ks = jax.random.split(key, 8)

  def kaiming(k, fan_in, shape):   # weights stored pre-transposed: (in, out)
    return jax.random.normal(k, shape, jnp.float32) * jnp.sqrt(2.0 / fan_in)

  w1 = kaiming(ks[0], 3 * din, (3 * din, hidden))
  b1 = 0.1 * jax.random.normal(ks[1], (1, hidden), jnp.float32)
  w2 = kaiming(ks[2], hidden, (hidden, 2 * hidden + dout))
  b2 = 0.1 * jax.random.normal(ks[3], (1, 2 * hidden + dout), jnp.float32)
  w3 = kaiming(ks[4], hidden, (hidden, hidden))
  b3 = 0.1 * jax.random.normal(ks[5], (1, hidden), jnp.float32)
  w4 = kaiming(ks[6], hidden, (hidden, dout))
  b4 = 0.1 * jax.random.normal(ks[7], (1, dout), jnp.float32)

  # Split W1 row-wise (s / p / o inputs) and W2/b2 column-wise (s / p / o outputs).
  w1s, w1p, w1o = w1[:din], w1[din:2 * din], w1[2 * din:]
  w2s, w2p, w2o = w2[:, :hidden], w2[:, hidden:hidden + dout], w2[:, hidden + dout:]
  b2s, b2p, b2o = b2[:, :hidden], b2[:, hidden:hidden + dout], b2[:, hidden + dout:]
  return (w1s, w1p, w1o, b1, w2s, w2p, w2o, b2s, b2p, b2o, w3, b3, w4, b4)


def reference(obj_vecs, pred_vecs, edges, params, pooling="avg"):
  (w1s, w1p, w1o, b1, w2s, w2p, w2o, b2s, b2p, b2o, w3, b3, w4, b4) = params
  H = w1s.shape[1]
  Dout = w4.shape[1]
  O = obj_vecs.shape[0]
  hp = functools.partial(jnp.dot, precision=jax.lax.Precision.HIGHEST)

  s_idx = edges[:, 0]
  o_idx = edges[:, 1]
  w1 = jnp.concatenate([w1s, w1p, w1o], axis=0)
  w2 = jnp.concatenate([w2s, w2p, w2o], axis=1)
  b2 = jnp.concatenate([b2s, b2p, b2o], axis=1)

  cur_t = jnp.concatenate([obj_vecs[s_idx], pred_vecs, obj_vecs[o_idx]], axis=1)
  h1 = jax.nn.relu(hp(cur_t, w1) + b1)
  t2 = jax.nn.relu(hp(h1, w2) + b2)
  new_s = t2[:, :H]
  new_p = t2[:, H:H + Dout]
  new_o = t2[:, H + Dout:]

  pooled = (jnp.zeros((O, H), jnp.float32)
            .at[s_idx].add(new_s).at[o_idx].add(new_o))
  if pooling == "avg":
    counts = (jnp.zeros((O,), jnp.float32)
              .at[s_idx].add(1.0).at[o_idx].add(1.0))
    pooled = pooled / jnp.maximum(counts, 1.0)[:, None]

  new_obj = jax.nn.relu(hp(jax.nn.relu(hp(pooled, w3) + b3), w4) + b4)
  return new_obj, new_p


if __name__ == "__main__":
  O, T = 32, 64         # objects, triples
  DIN = 128             # input_dim   (lane-aligned)
  HID = 128             # hidden_dim  (kept small but lane-aligned)
  DOUT = DIN            # output_dim defaults to input_dim

  key = jax.random.PRNGKey(0)
  k_obj, k_pred, k_edges, k_params = jax.random.split(key, 4)

  obj_vecs = jax.random.normal(k_obj, (O, DIN), dtype=jnp.float32)
  pred_vecs = jax.random.normal(k_pred, (T, DIN), dtype=jnp.float32)
  edges = jax.random.randint(k_edges, (T, 2), 0, O, dtype=jnp.int32)

  params = init_params(k_params, DIN, HID, DOUT)

  new_obj, new_p = graph_triple_conv(obj_vecs, pred_vecs, edges, params,
                                     pooling="avg", edge_tile=32)
  new_obj, new_p = jax.block_until_ready((new_obj, new_p))

  ref_obj, ref_p = reference(obj_vecs, pred_vecs, edges, params, pooling="avg")

  assert new_obj.shape == (O, DOUT) and new_p.shape == (T, DOUT)
  assert jnp.allclose(new_obj, ref_obj, atol=2e-3, rtol=2e-3), (
      float(jnp.max(jnp.abs(new_obj - ref_obj))))
  assert jnp.allclose(new_p, ref_p, atol=2e-3, rtol=2e-3), (
      float(jnp.max(jnp.abs(new_p - ref_p))))

  print("KERNEL_OK")
</pallas_src>

<mosaic_0001>
module attributes {stable_mosaic.version = 11 : i64} {
  func.func @graph_triple_conv_kernel(%arg0: i32, %arg1: memref<32x1xi32, #tpu.memory_space<vmem>>, %arg2: memref<32x1xi32, #tpu.memory_space<vmem>>, %arg3: memref<32x128xf32, #tpu.memory_space<vmem>>, %arg4: memref<32x128xf32, #tpu.memory_space<vmem>>, %arg5: memref<32x1xf32, #tpu.memory_space<vmem>>, %arg6: memref<128x128xf32, #tpu.memory_space<vmem>>, %arg7: memref<128x128xf32, #tpu.memory_space<vmem>>, %arg8: memref<128x128xf32, #tpu.memory_space<vmem>>, %arg9: memref<1x128xf32, #tpu.memory_space<vmem>>, %arg10: memref<128x128xf32, #tpu.memory_space<vmem>>, %arg11: memref<128x128xf32, #tpu.memory_space<vmem>>, %arg12: memref<128x128xf32, #tpu.memory_space<vmem>>, %arg13: memref<1x128xf32, #tpu.memory_space<vmem>>, %arg14: memref<1x128xf32, #tpu.memory_space<vmem>>, %arg15: memref<1x128xf32, #tpu.memory_space<vmem>>, %arg16: memref<128x128xf32, #tpu.memory_space<vmem>>, %arg17: memref<1x128xf32, #tpu.memory_space<vmem>>, %arg18: memref<128x128xf32, #tpu.memory_space<vmem>>, %arg19: memref<1x128xf32, #tpu.memory_space<vmem>>, %arg20: memref<32x128xf32, #tpu.memory_space<vmem>>, %arg21: memref<32x128xf32, #tpu.memory_space<vmem>>, %arg22: memref<32x128xf32, #tpu.memory_space<vmem>>, %arg23: memref<32x128xf32, #tpu.memory_space<vmem>>, %arg24: memref<32x128xf32, #tpu.memory_space<vmem>>) attributes {dimension_semantics = [#tpu.dimension_semantics<arbitrary>], iteration_bounds = array<i64: 2>, scalar_prefetch = 0 : i64, scratch_operands = 3 : i64, tpu.core_type = #tpu.core_type<tc>, window_params = [{transform_indices = @transform_0, window_bounds = array<i64: 32, 1>}, {transform_indices = @transform_1, window_bounds = array<i64: 32, 1>}, {transform_indices = @transform_2, window_bounds = array<i64: 32, 128>}, {pipeline_mode = #tpu.pipeline_mode<synchronous>, transform_indices = @transform_3, window_bounds = array<i64: 32, 128>}, {pipeline_mode = #tpu.pipeline_mode<synchronous>, transform_indices = @transform_4, window_bounds = array<i64: 32, 1>}, {pipeline_mode = #tpu.pipeline_mode<synchronous>, transform_indices = @transform_5, window_bounds = array<i64: 128, 128>}, {pipeline_mode = #tpu.pipeline_mode<synchronous>, transform_indices = @transform_6, window_bounds = array<i64: 128, 128>}, {pipeline_mode = #tpu.pipeline_mode<synchronous>, transform_indices = @transform_7, window_bounds = array<i64: 128, 128>}, {pipeline_mode = #tpu.pipeline_mode<synchronous>, transform_indices = @transform_8, window_bounds = array<i64: 1, 128>}, {pipeline_mode = #tpu.pipeline_mode<synchronous>, transform_indices = @transform_9, window_bounds = array<i64: 128, 128>}, {pipeline_mode = #tpu.pipeline_mode<synchronous>, transform_indices = @transform_10, window_bounds = array<i64: 128, 128>}, {pipeline_mode = #tpu.pipeline_mode<synchronous>, transform_indices = @transform_11, window_bounds = array<i64: 128, 128>}, {pipeline_mode = #tpu.pipeline_mode<synchronous>, transform_indices = @transform_12, window_bounds = array<i64: 1, 128>}, {pipeline_mode = #tpu.pipeline_mode<synchronous>, transform_indices = @transform_13, window_bounds = array<i64: 1, 128>}, {pipeline_mode = #tpu.pipeline_mode<synchronous>, transform_indices = @transform_14, window_bounds = array<i64: 1, 128>}, {pipeline_mode = #tpu.pipeline_mode<synchronous>, transform_indices = @transform_15, window_bounds = array<i64: 128, 128>}, {pipeline_mode = #tpu.pipeline_mode<synchronous>, transform_indices = @transform_16, window_bounds = array<i64: 1, 128>}, {pipeline_mode = #tpu.pipeline_mode<synchronous>, transform_indices = @transform_17, window_bounds = array<i64: 128, 128>}, {pipeline_mode = #tpu.pipeline_mode<synchronous>, transform_indices = @transform_18, window_bounds = array<i64: 1, 128>}, {pipeline_mode = #tpu.pipeline_mode<synchronous>, transform_indices = @transform_19, window_bounds = array<i64: 32, 128>}, {transform_indices = @transform_20, window_bounds = array<i64: 32, 128>}]} {
    %c0_i32 = arith.constant 0 : i32
    %0 = arith.cmpi eq, %arg0, %c0_i32 : i32
    %1 = arith.extui %0 : i1 to i32
    %c0_i32_0 = arith.constant 0 : i32
    %2 = arith.cmpi ne, %1, %c0_i32_0 : i32
    scf.if %2 {
      %c0_44 = arith.constant 0 : index
      %c0_45 = arith.constant 0 : index
      %59 = vector.load %arg4[%c0_44, %c0_45] : memref<32x128xf32, #tpu.memory_space<vmem>>, vector<32x128xf32>
      %c0_46 = arith.constant 0 : index
      %c0_47 = arith.constant 0 : index
      %60 = vector.load %arg6[%c0_46, %c0_47] : memref<128x128xf32, #tpu.memory_space<vmem>>, vector<128x128xf32>
      %cst_48 = arith.constant dense<0.000000e+00> : vector<32x128xf32>
      %61 = tpu.matmul %59, %60, %cst_48 {dimension_numbers = #tpu.dot_dimension_numbers<[1], [0], [0], [1], [0, 0, 1, 1], [], []>} : vector<32x128xf32>, vector<128x128xf32>, vector<32x128xf32> -> vector<32x128xf32>
      %c0_49 = arith.constant 0 : index
      %c0_50 = arith.constant 0 : index
      %62 = vector.load %arg22[%c0_49, %c0_50] : memref<32x128xf32, #tpu.memory_space<vmem>>, vector<32x128xf32>
      tpu.vector_store %arg22[%c0_49, %c0_50], %61 {strides = array<i32>} : memref<32x128xf32, #tpu.memory_space<vmem>>, vector<32x128xf32>,
      %c0_51 = arith.constant 0 : index
      %c0_52 = arith.constant 0 : index
      %63 = vector.load %arg8[%c0_51, %c0_52] : memref<128x128xf32, #tpu.memory_space<vmem>>, vector<128x128xf32>
      %cst_53 = arith.constant dense<0.000000e+00> : vector<32x128xf32>
      %64 = tpu.matmul %59, %63, %cst_53 {dimension_numbers = #tpu.dot_dimension_numbers<[1], [0], [0], [1], [0, 0, 1, 1], [], []>} : vector<32x128xf32>, vector<128x128xf32>, vector<32x128xf32> -> vector<32x128xf32>
      %c0_54 = arith.constant 0 : index
      %c0_55 = arith.constant 0 : index
      %65 = vector.load %arg23[%c0_54, %c0_55] : memref<32x128xf32, #tpu.memory_space<vmem>>, vector<32x128xf32>
      tpu.vector_store %arg23[%c0_54, %c0_55], %64 {strides = array<i32>} : memref<32x128xf32, #tpu.memory_space<vmem>>, vector<32x128xf32>,
      %cst_56 = arith.constant 0.000000e+00 : f32
      %66 = vector.broadcast %cst_56 : f32 to vector<32x128xf32>
      %c0_57 = arith.constant 0 : index
      %c0_58 = arith.constant 0 : index
      %67 = vector.load %arg24[%c0_57, %c0_58] : memref<32x128xf32, #tpu.memory_space<vmem>>, vector<32x128xf32>
      tpu.vector_store %arg24[%c0_57, %c0_58], %66 {strides = array<i32>} : memref<32x128xf32, #tpu.memory_space<vmem>>, vector<32x128xf32>,
    } else {
    }
    %3 = tpu.iota {dimensions = array<i32: 1>} : vector<32x32xi32>
    %c0 = arith.constant 0 : index
    %c0_1 = arith.constant 0 : index
    %4 = vector.load %arg1[%c0, %c0_1] : memref<32x1xi32, #tpu.memory_space<vmem>>, vector<32x1xi32>
    %5 = vector.broadcast %4 : vector<32x1xi32> to vector<32x32xi32>
    %6 = arith.cmpi eq, %3, %5 : vector<32x32xi32>
    %7 = arith.extui %6 : vector<32x32xi1> to vector<32x32xi32>
    %8 = arith.sitofp %7 : vector<32x32xi32> to vector<32x32xf32>
    %c0_2 = arith.constant 0 : index
    %c0_3 = arith.constant 0 : index
    %9 = vector.load %arg2[%c0_2, %c0_3] : memref<32x1xi32, #tpu.memory_space<vmem>>, vector<32x1xi32>
    %10 = vector.broadcast %9 : vector<32x1xi32> to vector<32x32xi32>
    %11 = arith.cmpi eq, %3, %10 : vector<32x32xi32>
    %12 = arith.extui %11 : vector<32x32xi1> to vector<32x32xi32>
    %13 = arith.sitofp %12 : vector<32x32xi32> to vector<32x32xf32>
    %c0_4 = arith.constant 0 : index
    %c0_5 = arith.constant 0 : index
    %14 = vector.load %arg22[%c0_4, %c0_5] : memref<32x128xf32, #tpu.memory_space<vmem>>, vector<32x128xf32>
    %cst = arith.constant dense<0.000000e+00> : vector<32x128xf32>
    %15 = tpu.matmul %8, %14, %cst {dimension_numbers = #tpu.dot_dimension_numbers<[1], [0], [0], [1], [0, 0, 1, 1], [], []>} : vector<32x32xf32>, vector<32x128xf32>, vector<32x128xf32> -> vector<32x128xf32>
    %c0_6 = arith.constant 0 : index
    %c0_7 = arith.constant 0 : index
    %16 = vector.load %arg23[%c0_6, %c0_7] : memref<32x128xf32, #tpu.memory_space<vmem>>, vector<32x128xf32>
    %cst_8 = arith.constant dense<0.000000e+00> : vector<32x128xf32>
    %17 = tpu.matmul %13, %16, %cst_8 {dimension_numbers = #tpu.dot_dimension_numbers<[1], [0], [0], [1], [0, 0, 1, 1], [], []>} : vector<32x32xf32>, vector<32x128xf32>, vector<32x128xf32> -> vector<32x128xf32>
    %18 = arith.addf %15, %17 : vector<32x128xf32>
    %c0_9 = arith.constant 0 : index
    %c0_10 = arith.constant 0 : index
    %19 = vector.load %arg3[%c0_9, %c0_10] : memref<32x128xf32, #tpu.memory_space<vmem>>, vector<32x128xf32>
    %c0_11 = arith.constant 0 : index
    %c0_12 = arith.constant 0 : index
    %20 = vector.load %arg7[%c0_11, %c0_12] : memref<128x128xf32, #tpu.memory_space<vmem>>, vector<128x128xf32>
    %cst_13 = arith.constant dense<0.000000e+00> : vector<32x128xf32>
    %21 = tpu.matmul %19, %20, %cst_13 {dimension_numbers = #tpu.dot_dimension_numbers<[1], [0], [0], [1], [0, 0, 1, 1], [], []>} : vector<32x128xf32>, vector<128x128xf32>, vector<32x128xf32> -> vector<32x128xf32>
    %22 = arith.addf %18, %21 : vector<32x128xf32>
    %c0_14 = arith.constant 0 : index
    %c0_15 = arith.constant 0 : index
    %23 = vector.load %arg9[%c0_14, %c0_15] : memref<1x128xf32, #tpu.memory_space<vmem>>, vector<1x128xf32>
    %24 = vector.broadcast %23 : vector<1x128xf32> to vector<32x128xf32>
    %25 = arith.addf %22, %24 : vector<32x128xf32>
    %cst_16 = arith.constant 0.000000e+00 : f32
    %26 = vector.broadcast %cst_16 : f32 to vector<32x128xf32>
    %27 = arith.maximumf %25, %26 : vector<32x128xf32>
    %c0_17 = arith.constant 0 : index
    %c0_18 = arith.constant 0 : index
    %28 = vector.load %arg10[%c0_17, %c0_18] : memref<128x128xf32, #tpu.memory_space<vmem>>, vector<128x128xf32>
    %cst_19 = arith.constant dense<0.000000e+00> : vector<32x128xf32>
    %29 = tpu.matmul %27, %28, %cst_19 {dimension_numbers = #tpu.dot_dimension_numbers<[1], [0], [0], [1], [0, 0, 1, 1], [], []>} : vector<32x128xf32>, vector<128x128xf32>, vector<32x128xf32> -> vector<32x128xf32>
    %c0_20 = arith.constant 0 : index
    %c0_21 = arith.constant 0 : index
    %30 = vector.load %arg13[%c0_20, %c0_21] : memref<1x128xf32, #tpu.memory_space<vmem>>, vector<1x128xf32>
    %31 = vector.broadcast %30 : vector<1x128xf32> to vector<32x128xf32>
    %32 = arith.addf %29, %31 : vector<32x128xf32>
    %cst_22 = arith.constant 0.000000e+00 : f32
    %33 = vector.broadcast %cst_22 : f32 to vector<32x128xf32>
    %34 = arith.maximumf %32, %33 : vector<32x128xf32>
    %c0_23 = arith.constant 0 : index
    %c0_24 = arith.constant 0 : index
    %35 = vector.load %arg11[%c0_23, %c0_24] : memref<128x128xf32, #tpu.memory_space<vmem>>, vector<128x128xf32>
    %cst_25 = arith.constant dense<0.000000e+00> : vector<32x128xf32>
    %36 = tpu.matmul %27, %35, %cst_25 {dimension_numbers = #tpu.dot_dimension_numbers<[1], [0], [0], [1], [0, 0, 1, 1], [], []>} : vector<32x128xf32>, vector<128x128xf32>, vector<32x128xf32> -> vector<32x128xf32>
    %c0_26 = arith.constant 0 : index
    %c0_27 = arith.constant 0 : index
    %37 = vector.load %arg14[%c0_26, %c0_27] : memref<1x128xf32, #tpu.memory_space<vmem>>, vector<1x128xf32>
    %38 = vector.broadcast %37 : vector<1x128xf32> to vector<32x128xf32>
    %39 = arith.addf %36, %38 : vector<32x128xf32>
    %cst_28 = arith.constant 0.000000e+00 : f32
    %40 = vector.broadcast %cst_28 : f32 to vector<32x128xf32>
    %41 = arith.maximumf %39, %40 : vector<32x128xf32>
    %c0_29 = arith.constant 0 : index
    %c0_30 = arith.constant 0 : index
    %42 = vector.load %arg12[%c0_29, %c0_30] : memref<128x128xf32, #tpu.memory_space<vmem>>, vector<128x128xf32>
    %cst_31 = arith.constant dense<0.000000e+00> : vector<32x128xf32>
    %43 = tpu.matmul %27, %42, %cst_31 {dimension_numbers = #tpu.dot_dimension_numbers<[1], [0], [0], [1], [0, 0, 1, 1], [], []>} : vector<32x128xf32>, vector<128x128xf32>, vector<32x128xf32> -> vector<32x128xf32>
    %c0_32 = arith.constant 0 : index
    %c0_33 = arith.constant 0 : index
    %44 = vector.load %arg15[%c0_32, %c0_33] : memref<1x128xf32, #tpu.memory_space<vmem>>, vector<1x128xf32>
    %45 = vector.broadcast %44 : vector<1x128xf32> to vector<32x128xf32>
    %46 = arith.addf %43, %45 : vector<32x128xf32>
    %cst_34 = arith.constant 0.000000e+00 : f32
    %47 = vector.broadcast %cst_34 : f32 to vector<32x128xf32>
    %48 = arith.maximumf %46, %47 : vector<32x128xf32>
    %c0_35 = arith.constant 0 : index
    %c0_36 = arith.constant 0 : index
    %49 = vector.load %arg21[%c0_35, %c0_36] : memref<32x128xf32, #tpu.memory_space<vmem>>, vector<32x128xf32>
    tpu.vector_store %arg21[%c0_35, %c0_36], %41 {strides = array<i32>} : memref<32x128xf32, #tpu.memory_space<vmem>>, vector<32x128xf32>,
    %c0_37 = arith.constant 0 : index
    %c0_38 = arith.constant 0 : index
    %50 = vector.load %arg24[%c0_37, %c0_38] : memref<32x128xf32, #tpu.memory_space<vmem>>, vector<32x128xf32>
    %cst_39 = arith.constant dense<0.000000e+00> : vector<32x128xf32>
    %51 = tpu.matmul %8, %34, %cst_39 {dimension_numbers = #tpu.dot_dimension_numbers<[0], [0], [1], [1], [0, 1, 1, 1], [], []>} : vector<32x32xf32>, vector<32x128xf32>, vector<32x128xf32> -> vector<32x128xf32>
    %cst_40 = arith.constant dense<0.000000e+00> : vector<32x128xf32>
    %52 = tpu.matmul %13, %48, %cst_40 {dimension_numbers = #tpu.dot_dimension_numbers<[0], [0], [1], [1], [0, 1, 1, 1], [], []>} : vector<32x32xf32>, vector<32x128xf32>, vector<32x128xf32> -> vector<32x128xf32>
    %53 = arith.addf %51, %52 : vector<32x128xf32>
    %54 = arith.addf %50, %53 : vector<32x128xf32>
    %c0_41 = arith.constant 0 : index
    %c0_42 = arith.constant 0 : index
    %55 = vector.load %arg24[%c0_41, %c0_42] : memref<32x128xf32, #tpu.memory_space<vmem>>, vector<32x128xf32>
    tpu.vector_store %arg24[%c0_41, %c0_42], %54 {strides = array<i32>} : memref<32x128xf32, #tpu.memory_space<vmem>>, vector<32x128xf32>,
    %c1_i32 = arith.constant 1 : i32
    %56 = arith.cmpi eq, %arg0, %c1_i32 : i32
    %57 = arith.extui %56 : i1 to i32
    %c0_i32_43 = arith.constant 0 : i32
    %58 = arith.cmpi ne, %57, %c0_i32_43 : i32
    scf.if %58 {
      %c0_44 = arith.constant 0 : index
      %c0_45 = arith.constant 0 : index
      %59 = vector.load %arg24[%c0_44, %c0_45] : memref<32x128xf32, #tpu.memory_space<vmem>>, vector<32x128xf32>
      %c0_46 = arith.constant 0 : index
      %c0_47 = arith.constant 0 : index
      %60 = vector.load %arg5[%c0_46, %c0_47] : memref<32x1xf32, #tpu.memory_space<vmem>>, vector<32x1xf32>
      %61 = vector.broadcast %60 : vector<32x1xf32> to vector<32x128xf32>
      %62 = arith.mulf %59, %61 : vector<32x128xf32>
      %c0_48 = arith.constant 0 : index
      %c0_49 = arith.constant 0 : index
      %63 = vector.load %arg16[%c0_48, %c0_49] : memref<128x128xf32, #tpu.memory_space<vmem>>, vector<128x128xf32>
      %cst_50 = arith.constant dense<0.000000e+00> : vector<32x128xf32>
      %64 = tpu.matmul %62, %63, %cst_50 {dimension_numbers = #tpu.dot_dimension_numbers<[1], [0], [0], [1], [0, 0, 1, 1], [], []>} : vector<32x128xf32>, vector<128x128xf32>, vector<32x128xf32> -> vector<32x128xf32>
      %c0_51 = arith.constant 0 : index
      %c0_52 = arith.constant 0 : index
      %65 = vector.load %arg17[%c0_51, %c0_52] : memref<1x128xf32, #tpu.memory_space<vmem>>, vector<1x128xf32>
      %66 = vector.broadcast %65 : vector<1x128xf32> to vector<32x128xf32>
      %67 = arith.addf %64, %66 : vector<32x128xf32>
      %cst_53 = arith.constant 0.000000e+00 : f32
      %68 = vector.broadcast %cst_53 : f32 to vector<32x128xf32>
      %69 = arith.maximumf %67, %68 : vector<32x128xf32>
      %c0_54 = arith.constant 0 : index
      %c0_55 = arith.constant 0 : index
      %70 = vector.load %arg18[%c0_54, %c0_55] : memref<128x128xf32, #tpu.memory_space<vmem>>, vector<128x128xf32>
      %cst_56 = arith.constant dense<0.000000e+00> : vector<32x128xf32>
      %71 = tpu.matmul %69, %70, %cst_56 {dimension_numbers = #tpu.dot_dimension_numbers<[1], [0], [0], [1], [0, 0, 1, 1], [], []>} : vector<32x128xf32>, vector<128x128xf32>, vector<32x128xf32> -> vector<32x128xf32>
      %c0_57 = arith.constant 0 : index
      %c0_58 = arith.constant 0 : index
      %72 = vector.load %arg19[%c0_57, %c0_58] : memref<1x128xf32, #tpu.memory_space<vmem>>, vector<1x128xf32>
      %73 = vector.broadcast %72 : vector<1x128xf32> to vector<32x128xf32>
      %74 = arith.addf %71, %73 : vector<32x128xf32>
      %cst_59 = arith.constant 0.000000e+00 : f32
      %75 = vector.broadcast %cst_59 : f32 to vector<32x128xf32>
      %76 = arith.maximumf %74, %75 : vector<32x128xf32>
      %c0_60 = arith.constant 0 : index
      %c0_61 = arith.constant 0 : index
      %77 = vector.load %arg20[%c0_60, %c0_61] : memref<32x128xf32, #tpu.memory_space<vmem>>, vector<32x128xf32>
      tpu.vector_store %arg20[%c0_60, %c0_61], %76 {strides = array<i32>} : memref<32x128xf32, #tpu.memory_space<vmem>>, vector<32x128xf32>,
    } else {
    }
    return
  }
  func.func @transform_0(%arg0: i32) -> (i32, i32) {
    %c0_i32 = arith.constant 0 : i32
    %c0_i32_0 = arith.constant 0 : i32
    return %arg0, %c0_i32 : i32, i32
  }
  func.func @transform_1(%arg0: i32) -> (i32, i32) {
    %c0_i32 = arith.constant 0 : i32
    %c0_i32_0 = arith.constant 0 : i32
    return %arg0, %c0_i32 : i32, i32
  }
  func.func @transform_2(%arg0: i32) -> (i32, i32) {
    %c0_i32 = arith.constant 0 : i32
    %c0_i32_0 = arith.constant 0 : i32
    return %arg0, %c0_i32 : i32, i32
  }
  func.func @transform_3(%arg0: i32) -> (i32, i32) {
    %c0_i32 = arith.constant 0 : i32
    %c0_i32_0 = arith.constant 0 : i32
    %c0_i32_1 = arith.constant 0 : i32
    return %c0_i32, %c0_i32_0 : i32, i32
  }
  func.func @transform_4(%arg0: i32) -> (i32, i32) {
    %c0_i32 = arith.constant 0 : i32
    %c0_i32_0 = arith.constant 0 : i32
    %c0_i32_1 = arith.constant 0 : i32
    return %c0_i32, %c0_i32_0 : i32, i32
  }
  func.func @transform_5(%arg0: i32) -> (i32, i32) {
    %c0_i32 = arith.constant 0 : i32
    %c0_i32_0 = arith.constant 0 : i32
    %c0_i32_1 = arith.constant 0 : i32
    return %c0_i32, %c0_i32_0 : i32, i32
  }
  func.func @transform_6(%arg0: i32) -> (i32, i32) {
    %c0_i32 = arith.constant 0 : i32
    %c0_i32_0 = arith.constant 0 : i32
    %c0_i32_1 = arith.constant 0 : i32
    return %c0_i32, %c0_i32_0 : i32, i32
  }
  func.func @transform_7(%arg0: i32) -> (i32, i32) {
    %c0_i32 = arith.constant 0 : i32
    %c0_i32_0 = arith.constant 0 : i32
    %c0_i32_1 = arith.constant 0 : i32
    return %c0_i32, %c0_i32_0 : i32, i32
  }
  func.func @transform_8(%arg0: i32) -> (i32, i32) {
    %c0_i32 = arith.constant 0 : i32
    %c0_i32_0 = arith.constant 0 : i32
    %c0_i32_1 = arith.constant 0 : i32
    return %c0_i32, %c0_i32_0 : i32, i32
  }
  func.func @transform_9(%arg0: i32) -> (i32, i32) {
    %c0_i32 = arith.constant 0 : i32
    %c0_i32_0 = arith.constant 0 : i32
    %c0_i32_1 = arith.constant 0 : i32
    return %c0_i32, %c0_i32_0 : i32, i32
  }
  func.func @transform_10(%arg0: i32) -> (i32, i32) {
    %c0_i32 = arith.constant 0 : i32
    %c0_i32_0 = arith.constant 0 : i32
    %c0_i32_1 = arith.constant 0 : i32
    return %c0_i32, %c0_i32_0 : i32, i32
  }
  func.func @transform_11(%arg0: i32) -> (i32, i32) {
    %c0_i32 = arith.constant 0 : i32
    %c0_i32_0 = arith.constant 0 : i32
    %c0_i32_1 = arith.constant 0 : i32
    return %c0_i32, %c0_i32_0 : i32, i32
  }
  func.func @transform_12(%arg0: i32) -> (i32, i32) {
    %c0_i32 = arith.constant 0 : i32
    %c0_i32_0 = arith.constant 0 : i32
    %c0_i32_1 = arith.constant 0 : i32
    return %c0_i32, %c0_i32_0 : i32, i32
  }
  func.func @transform_13(%arg0: i32) -> (i32, i32) {
    %c0_i32 = arith.constant 0 : i32
    %c0_i32_0 = arith.constant 0 : i32
    %c0_i32_1 = arith.constant 0 : i32
    return %c0_i32, %c0_i32_0 : i32, i32
  }
  func.func @transform_14(%arg0: i32) -> (i32, i32) {
    %c0_i32 = arith.constant 0 : i32
    %c0_i32_0 = arith.constant 0 : i32
    %c0_i32_1 = arith.constant 0 : i32
    return %c0_i32, %c0_i32_0 : i32, i32
  }
  func.func @transform_15(%arg0: i32) -> (i32, i32) {
    %c0_i32 = arith.constant 0 : i32
    %c0_i32_0 = arith.constant 0 : i32
    %c0_i32_1 = arith.constant 0 : i32
    return %c0_i32, %c0_i32_0 : i32, i32
  }
  func.func @transform_16(%arg0: i32) -> (i32, i32) {
    %c0_i32 = arith.constant 0 : i32
    %c0_i32_0 = arith.constant 0 : i32
    %c0_i32_1 = arith.constant 0 : i32
    return %c0_i32, %c0_i32_0 : i32, i32
  }
  func.func @transform_17(%arg0: i32) -> (i32, i32) {
    %c0_i32 = arith.constant 0 : i32
    %c0_i32_0 = arith.constant 0 : i32
    %c0_i32_1 = arith.constant 0 : i32
    return %c0_i32, %c0_i32_0 : i32, i32
  }
  func.func @transform_18(%arg0: i32) -> (i32, i32) {
    %c0_i32 = arith.constant 0 : i32
    %c0_i32_0 = arith.constant 0 : i32
    %c0_i32_1 = arith.constant 0 : i32
    return %c0_i32, %c0_i32_0 : i32, i32
  }
  func.func @transform_19(%arg0: i32) -> (i32, i32) {
    %c0_i32 = arith.constant 0 : i32
    %c0_i32_0 = arith.constant 0 : i32
    %c0_i32_1 = arith.constant 0 : i32
    return %c0_i32, %c0_i32_0 : i32, i32
  }
  func.func @transform_20(%arg0: i32) -> (i32, i32) {
    %c0_i32 = arith.constant 0 : i32
    %c0_i32_0 = arith.constant 0 : i32
    return %arg0, %c0_i32 : i32, i32
  }
}

</mosaic_0001>

<llo_original>
// kernel: tpu_custom_call.1
$region0: #{tpu_custom_call.1}
  #allocation0 [shape = 'u32[]', space=smem, size = 0x4, offset = 0x4, fixed_abs, tag = 'smem constant byte address 0x4 - core index']
  #allocation1 [shape = 'u32[144,128]{1,0:T(1,128)}', space=vmem, size = 0x12000, scoped, tag = 'internal scratch']
  #allocation2 [shape = 'f32[32,128]{1,0:T(8,128)}', space=vmem, size = 0x4000, scoped, tag = 'scratch operand']
  #allocation3 [shape = 'f32[32,128]{1,0:T(8,128)}', space=vmem, size = 0x4000, scoped, tag = 'scratch operand']
  #allocation4 [shape = 'f32[32,128]{1,0:T(8,128)}', space=vmem, size = 0x4000, scoped, tag = 'scratch operand']
  %s0 = inlined_call_operand.vmem [shape: s32[64,1], index: 0, kind: input, shape index: {}]
  %s1 = inlined_call_operand.vmem [shape: s32[64,1], index: 1, kind: input, shape index: {}]
  %s2 = inlined_call_operand.hbm [shape: f32[64,128], index: 2, kind: input, shape index: {}]
  %s3 = inlined_call_operand.vmem [shape: f32[32,128], index: 3, kind: input, shape index: {}]
  %s4 = inlined_call_operand.vmem [shape: f32[32,1], index: 4, kind: input, shape index: {}]
  %s5 = inlined_call_operand.vmem [shape: f32[128,128], index: 5, kind: input, shape index: {}]
  %s6 = inlined_call_operand.hbm [shape: f32[128,128], index: 6, kind: input, shape index: {}]
  %s7 = inlined_call_operand.hbm [shape: f32[128,128], index: 7, kind: input, shape index: {}]
  %s8 = inlined_call_operand.vmem [shape: f32[1,128], index: 8, kind: input, shape index: {}]
  %s9 = inlined_call_operand.hbm [shape: f32[128,128], index: 9, kind: input, shape index: {}]
  %s10 = inlined_call_operand.hbm [shape: f32[128,128], index: 10, kind: input, shape index: {}]
  %s11 = inlined_call_operand.hbm [shape: f32[128,128], index: 11, kind: input, shape index: {}]
  %s12 = inlined_call_operand.vmem [shape: f32[1,128], index: 12, kind: input, shape index: {}]
  %s13 = inlined_call_operand.vmem [shape: f32[1,128], index: 13, kind: input, shape index: {}]
  %s14 = inlined_call_operand.vmem [shape: f32[1,128], index: 14, kind: input, shape index: {}]
  %s15 = inlined_call_operand.hbm [shape: f32[128,128], index: 15, kind: input, shape index: {}]
  %s16 = inlined_call_operand.vmem [shape: f32[1,128], index: 16, kind: input, shape index: {}]
  %s17 = inlined_call_operand.hbm [shape: f32[128,128], index: 17, kind: input, shape index: {}]
  %s18 = inlined_call_operand.vmem [shape: f32[1,128], index: 18, kind: input, shape index: {}]
  %s19 = inlined_call_operand.hbm [shape: f32[32,128], index: 19, kind: output, shape index: {0}]
  %s20 = inlined_call_operand.hbm [shape: f32[64,128], index: 20, kind: output, shape index: {1}]
  %21 = xla_tuple %s19, %s20
  %s22 = sld [smem:[#allocation0]]
  $region157: #{tpu_custom_call.1} parent=0
    _
  %s24 = ssub.s32 1, %s22
  %s25 = scalar_select 0, %s24, %s22
  $region1: #{tpu_custom_call.1} parent=0
    #allocation5 [shape = 'u8[32768]{0}', space=vmem, size = 0x8000, scoped, tag = 'input window, operand 2']
    #allocation6 [shape = 's32[2]{0}', space=sflag, size = 0x8, scoped, tag = 'scoped memory for tpu_custom_call.1']
    #allocation7 [shape = 's32[2]{0}', space=sflag, size = 0x8, scoped, tag = 'scoped memory for tpu_custom_call.1']
    #allocation8 [shape = 'u8[65536]{0}', space=vmem, size = 0x10000, scoped, tag = 'input window, operand 6, single buffered']
    #allocation9 [shape = 's32[1]{0}', space=sflag, size = 0x4, scoped, tag = 'scoped memory for tpu_custom_call.1']
    #allocation10 [shape = 'u8[65536]{0}', space=vmem, size = 0x10000, scoped, tag = 'input window, operand 7, single buffered']
    #allocation11 [shape = 'u8[65536]{0}', space=vmem, size = 0x10000, scoped, tag = 'input window, operand 9, single buffered']
    #allocation12 [shape = 's32[1]{0}', space=sflag, size = 0x4, scoped, tag = 'scoped memory for tpu_custom_call.1']
    #allocation13 [shape = 'u8[65536]{0}', space=vmem, size = 0x10000, scoped, tag = 'input window, operand 10, single buffered']
    #allocation14 [shape = 'u8[65536]{0}', space=vmem, size = 0x10000, scoped, tag = 'input window, operand 11, single buffered']
    #allocation15 [shape = 's32[1]{0}', space=sflag, size = 0x4, scoped, tag = 'scoped memory for tpu_custom_call.1']
    #allocation16 [shape = 'u8[65536]{0}', space=vmem, size = 0x10000, scoped, tag = 'input window, operand 15, single buffered']
    #allocation17 [shape = 'u8[65536]{0}', space=vmem, size = 0x10000, scoped, tag = 'input window, operand 17, single buffered']
    #allocation18 [shape = 's32[1]{0}', space=sflag, size = 0x4, scoped, tag = 'scoped memory for tpu_custom_call.1']
    #allocation19 [shape = 'u8[16384]{0}', space=vmem, size = 0x4000, scoped, tag = 'output window, operand 0, single buffered']
    #allocation20 [shape = 'u8[32768]{0}', space=vmem, size = 0x8000, scoped, tag = 'output window, operand 1']
    #allocation21 [shape = 's32[2]{0}', space=sflag, size = 0x8, scoped, tag = 'scoped memory for tpu_custom_call.1']
    %26 = vsyncpa [#allocation6], 0
    %s27 = scalar_lea.sflag [#allocation6], 1
    %28 = vsyncpa %s27, 0
    %29 = vsyncpa [#allocation9], 0
    %30 = vsyncpa [#allocation12], 0
    %31 = vsyncpa [#allocation15], 0
    %32 = vsyncpa [#allocation18], 0
    %33 = vsyncpa [#allocation7], 0
    %34 = vsyncpa [#allocation21], 0
    %s35 = scalar_lea.sflag [#allocation21], 1
    %36 = vsyncpa %s35, 0
    loop: start=0, step=1, limit=4
    $region2: #{tpu_custom_call.1} parent=1 // loop_pre_header
      _
    $region3: #{tpu_custom_call.1} parent=1 // loop_header
      %s38 = sphi 0, %s42
      %p39 = scmp.ge.s32.totalorder %s38, 4
      %s48 = sphi 0, %s50
      %s51 = sphi 0, %s48
      %s52 = sphi 0, %s51
      %s68 = sphi 0, %s52
      %s74 = sphi 0, %s76
      %s77 = sphi 0, %s74
      %s78 = sphi 0, %s77
      %s94 = sphi 0, %s78
      %s100 = sphi 0, %s102
      %s103 = sphi 0, %s100
      %s104 = sphi 0, %s103
      %s120 = sphi 0, %s104
      %s124 = sphi 0, %s124
      %s126 = sphi 0, %s124
      %s127 = sphi 0, %s126
      %s141 = sphi 0, %s127
      %s145 = sphi 0, %s145
      %s147 = sphi 0, %s145
      %s148 = sphi 0, %s147
      %s162 = sphi 0, %s148
      %s166 = sphi 0, %s166
      %s168 = sphi 0, %s166
      %s169 = sphi 0, %s168
      %s183 = sphi 0, %s169
      %s187 = sphi 0, %s187
      %s189 = sphi 0, %s187
      %s190 = sphi 0, %s189
      %s204 = sphi 0, %s190
      %s208 = sphi 0, %s208
      %s210 = sphi 0, %s208
      %s211 = sphi 0, %s210
      %s225 = sphi 0, %s211
      %s229 = sphi 0, %s229
      %s231 = sphi 0, %s229
      %s232 = sphi 0, %s231
      %s246 = sphi 0, %s232
      %s250 = sphi 0, %s250
      %s252 = sphi 0, %s250
      %s253 = sphi 0, %s252
      %s267 = sphi 0, %s253
      %s271 = sphi 0, %s271
      %s273 = sphi 0, %s271
      %s274 = sphi 0, %s273
      %s288 = sphi 0, %s274
      %s292 = sphi 0, %s292
      %s294 = sphi 0, %s292
      %s295 = sphi 0, %s294
      %s309 = sphi 0, %s295
      %s313 = sphi 0, %s313
      %s315 = sphi 0, %s313
      %s316 = sphi 0, %s315
      %s330 = sphi 0, %s316
      %s334 = sphi 0, %s334
      %s336 = sphi 0, %s334
      %s337 = sphi 0, %s336
      %s351 = sphi 0, %s337
      %s355 = sphi 0, %s355
      %s357 = sphi 0, %s355
      %s358 = sphi 0, %s357
      %s372 = sphi 0, %s358
      %s376 = sphi 0, %s376
      %s378 = sphi 0, %s376
      %s379 = sphi 0, %s378
      %s393 = sphi 0, %s379
      %s397 = sphi 0, %s397
      %s399 = sphi 0, %s397
      %s400 = sphi 0, %s399
      %s414 = sphi 0, %s400
      %s418 = sphi 0, %s418
      %s420 = sphi 0, %s418
      %s421 = sphi 0, %s420
      %s435 = sphi 0, %s421
      %s439 = sphi 0, %s439
      %s441 = sphi 0, %s439
      %s442 = sphi 0, %s441
      %s456 = sphi 0, %s442
      %s460 = sphi 0, %s460
      %s462 = sphi 0, %s460
      %s463 = sphi 0, %s462
      %s477 = sphi 0, %s463
      %s483 = sphi 0, %s485
      %s486 = sphi 0, %s483
      %s487 = sphi 0, %s486
      %s503 = sphi 0, %s487
    $region4: #{tpu_custom_call.1} parent=1 // loop_header_branch
      %41 = sbr.rel (%p39) target = $region8
    $region5: #{tpu_custom_call.1} parent=1 // loop_body
      %s43 = ssub.s32 %s38, 1
      %s44 = ssub.s32 %s38, 2
      %s45 = sadd.s32 %s38, 1
      %s46 = ssub.s32 %s38, %s45
      %p47 = scmp.eq.s32.totalorder %s46, 0
      %s49 = sadd.s32 %s48, 1
      %s50 = scalar_select %p47, %s48, %s49
      %p53 = pneg %p47
      %p54 = scmp.eq.s32.totalorder %s38, 1
      %p55 = por %p53, %p54
      %p56 = scmp.ne.s32.totalorder %s48, %s51
      %p57 = scmp.eq.s32.totalorder %s38, 0
      %p58 = por %p56, %p57
      %p59 = scmp.ne.s32.totalorder %s48, %s51
      %p60 = scmp.eq.s32.totalorder %s43, 1
      %p61 = por %p59, %p60
      %p62 = scmp.ne.s32.totalorder %s51, %s52
      %p63 = scmp.eq.s32.totalorder %s43, 0
      %p64 = por %p62, %p63
      %p65 = scmp.ne.s32.totalorder %s51, %s52
      %p66 = scmp.eq.s32.totalorder %s44, 1
      %p67 = por %p65, %p66
      %p69 = scmp.ne.s32.totalorder %s52, %s68
      %p70 = scmp.eq.s32.totalorder %s44, 0
      %p71 = por %p69, %p70
      %s72 = ssub.s32 %s38, %s45
      %p73 = scmp.eq.s32.totalorder %s72, 0
      %s75 = sadd.s32 %s74, 1
      %s76 = scalar_select %p73, %s74, %s75
      %p79 = pneg %p73
      %p80 = scmp.eq.s32.totalorder %s38, 1
      %p81 = por %p79, %p80
      %p82 = scmp.ne.s32.totalorder %s74, %s77
      %p83 = scmp.eq.s32.totalorder %s38, 0
      %p84 = por %p82, %p83
      %p85 = scmp.ne.s32.totalorder %s74, %s77
      %p86 = scmp.eq.s32.totalorder %s43, 1
      %p87 = por %p85, %p86
      %p88 = scmp.ne.s32.totalorder %s77, %s78
      %p89 = scmp.eq.s32.totalorder %s43, 0
      %p90 = por %p88, %p89
      %p91 = scmp.ne.s32.totalorder %s77, %s78
      %p92 = scmp.eq.s32.totalorder %s44, 1
      %p93 = por %p91, %p92
      %p95 = scmp.ne.s32.totalorder %s78, %s94
      %p96 = scmp.eq.s32.totalorder %s44, 0
      %p97 = por %p95, %p96
      %s98 = ssub.s32 %s38, %s45
      %p99 = scmp.eq.s32.totalorder %s98, 0
      %s101 = sadd.s32 %s100, 1
      %s102 = scalar_select %p99, %s100, %s101
      %p105 = pneg %p99
      %p106 = scmp.eq.s32.totalorder %s38, 1
      %p107 = por %p105, %p106
      %p108 = scmp.ne.s32.totalorder %s100, %s103
      %p109 = scmp.eq.s32.totalorder %s38, 0
      %p110 = por %p108, %p109
      %p111 = scmp.ne.s32.totalorder %s100, %s103
      %p112 = scmp.eq.s32.totalorder %s43, 1
      %p113 = por %p111, %p112
      %p114 = scmp.ne.s32.totalorder %s103, %s104
      %p115 = scmp.eq.s32.totalorder %s43, 0
      %p116 = por %p114, %p115
      %p117 = scmp.ne.s32.totalorder %s103, %s104
      %p118 = scmp.eq.s32.totalorder %s44, 1
      %p119 = por %p117, %p118
      %p121 = scmp.ne.s32.totalorder %s104, %s120
      %p122 = scmp.eq.s32.totalorder %s44, 0
      %p123 = por %p121, %p122
      %s125 = sadd.s32 %s124, 1
      %p128 = scmp.eq.s32.totalorder %s38, 1
      %p129 = scmp.ne.s32.totalorder %s124, %s126
      %p130 = scmp.eq.s32.totalorder %s38, 0
      %p131 = por %p129, %p130
      %p132 = scmp.ne.s32.totalorder %s124, %s126
      %p133 = scmp.eq.s32.totalorder %s43, 1
      %p134 = por %p132, %p133
      %p135 = scmp.ne.s32.totalorder %s126, %s127
      %p136 = scmp.eq.s32.totalorder %s43, 0
      %p137 = por %p135, %p136
      %p138 = scmp.ne.s32.totalorder %s126, %s127
      %p139 = scmp.eq.s32.totalorder %s44, 1
      %p140 = por %p138, %p139
      %p142 = scmp.ne.s32.totalorder %s127, %s141
      %p143 = scmp.eq.s32.totalorder %s44, 0
      %p144 = por %p142, %p143
      %s146 = sadd.s32 %s145, 1
      %p149 = scmp.eq.s32.totalorder %s38, 1
      %p150 = scmp.ne.s32.totalorder %s145, %s147
      %p151 = scmp.eq.s32.totalorder %s38, 0
      %p152 = por %p150, %p151
      %p153 = scmp.ne.s32.totalorder %s145, %s147
      %p154 = scmp.eq.s32.totalorder %s43, 1
      %p155 = por %p153, %p154
      %p156 = scmp.ne.s32.totalorder %s147, %s148
      %p157 = scmp.eq.s32.totalorder %s43, 0
      %p158 = por %p156, %p157
      %p159 = scmp.ne.s32.totalorder %s147, %s148
      %p160 = scmp.eq.s32.totalorder %s44, 1
      %p161 = por %p159, %p160
      %p163 = scmp.ne.s32.totalorder %s148, %s162
      %p164 = scmp.eq.s32.totalorder %s44, 0
      %p165 = por %p163, %p164
      %s167 = sadd.s32 %s166, 1
      %p170 = scmp.eq.s32.totalorder %s38, 1
      %p171 = scmp.ne.s32.totalorder %s166, %s168
      %p172 = scmp.eq.s32.totalorder %s38, 0
      %p173 = por %p171, %p172
      %p174 = scmp.ne.s32.totalorder %s166, %s168
      %p175 = scmp.eq.s32.totalorder %s43, 1
      %p176 = por %p174, %p175
      %p177 = scmp.ne.s32.totalorder %s168, %s169
      %p178 = scmp.eq.s32.totalorder %s43, 0
      %p179 = por %p177, %p178
      %p180 = scmp.ne.s32.totalorder %s168, %s169
      %p181 = scmp.eq.s32.totalorder %s44, 1
      %p182 = por %p180, %p181
      %p184 = scmp.ne.s32.totalorder %s169, %s183
      %p185 = scmp.eq.s32.totalorder %s44, 0
      %p186 = por %p184, %p185
      %s188 = sadd.s32 %s187, 1
      %p191 = scmp.eq.s32.totalorder %s38, 1
      %p192 = scmp.ne.s32.totalorder %s187, %s189
      %p193 = scmp.eq.s32.totalorder %s38, 0
      %p194 = por %p192, %p193
      %p195 = scmp.ne.s32.totalorder %s187, %s189
      %p196 = scmp.eq.s32.totalorder %s43, 1
      %p197 = por %p195, %p196
      %p198 = scmp.ne.s32.totalorder %s189, %s190
      %p199 = scmp.eq.s32.totalorder %s43, 0
      %p200 = por %p198, %p199
      %p201 = scmp.ne.s32.totalorder %s189, %s190
      %p202 = scmp.eq.s32.totalorder %s44, 1
      %p203 = por %p201, %p202
      %p205 = scmp.ne.s32.totalorder %s190, %s204
      %p206 = scmp.eq.s32.totalorder %s44, 0
      %p207 = por %p205, %p206
      %s209 = sadd.s32 %s208, 1
      %p212 = scmp.eq.s32.totalorder %s38, 1
      %p213 = scmp.ne.s32.totalorder %s208, %s210
      %p214 = scmp.eq.s32.totalorder %s38, 0
      %p215 = por %p213, %p214
      %p216 = scmp.ne.s32.totalorder %s208, %s210
      %p217 = scmp.eq.s32.totalorder %s43, 1
      %p218 = por %p216, %p217
      %p219 = scmp.ne.s32.totalorder %s210, %s211
      %p220 = scmp.eq.s32.totalorder %s43, 0
      %p221 = por %p219, %p220
      %p222 = scmp.ne.s32.totalorder %s210, %s211
      %p223 = scmp.eq.s32.totalorder %s44, 1
      %p224 = por %p222, %p223
      %p226 = scmp.ne.s32.totalorder %s211, %s225
      %p227 = scmp.eq.s32.totalorder %s44, 0
      %p228 = por %p226, %p227
      %s230 = sadd.s32 %s229, 1
      %p233 = scmp.eq.s32.totalorder %s38, 1
      %p234 = scmp.ne.s32.totalorder %s229, %s231
      %p235 = scmp.eq.s32.totalorder %s38, 0
      %p236 = por %p234, %p235
      %p237 = scmp.ne.s32.totalorder %s229, %s231
      %p238 = scmp.eq.s32.totalorder %s43, 1
      %p239 = por %p237, %p238
      %p240 = scmp.ne.s32.totalorder %s231, %s232
      %p241 = scmp.eq.s32.totalorder %s43, 0
      %p242 = por %p240, %p241
      %p243 = scmp.ne.s32.totalorder %s231, %s232
      %p244 = scmp.eq.s32.totalorder %s44, 1
      %p245 = por %p243, %p244
      %p247 = scmp.ne.s32.totalorder %s232, %s246
      %p248 = scmp.eq.s32.totalorder %s44, 0
      %p249 = por %p247, %p248
      %s251 = sadd.s32 %s250, 1
      %p254 = scmp.eq.s32.totalorder %s38, 1
      %p255 = scmp.ne.s32.totalorder %s250, %s252
      %p256 = scmp.eq.s32.totalorder %s38, 0
      %p257 = por %p255, %p256
      %p258 = scmp.ne.s32.totalorder %s250, %s252
      %p259 = scmp.eq.s32.totalorder %s43, 1
      %p260 = por %p258, %p259
      %p261 = scmp.ne.s32.totalorder %s252, %s253
      %p262 = scmp.eq.s32.totalorder %s43, 0
      %p263 = por %p261, %p262
      %p264 = scmp.ne.s32.totalorder %s252, %s253
      %p265 = scmp.eq.s32.totalorder %s44, 1
      %p266 = por %p264, %p265
      %p268 = scmp.ne.s32.totalorder %s253, %s267
      %p269 = scmp.eq.s32.totalorder %s44, 0
      %p270 = por %p268, %p269
      %s272 = sadd.s32 %s271, 1
      %p275 = scmp.eq.s32.totalorder %s38, 1
      %p276 = scmp.ne.s32.totalorder %s271, %s273
      %p277 = scmp.eq.s32.totalorder %s38, 0
      %p278 = por %p276, %p277
      %p279 = scmp.ne.s32.totalorder %s271, %s273
      %p280 = scmp.eq.s32.totalorder %s43, 1
      %p281 = por %p279, %p280
      %p282 = scmp.ne.s32.totalorder %s273, %s274
      %p283 = scmp.eq.s32.totalorder %s43, 0
      %p284 = por %p282, %p283
      %p285 = scmp.ne.s32.totalorder %s273, %s274
      %p286 = scmp.eq.s32.totalorder %s44, 1
      %p287 = por %p285, %p286
      %p289 = scmp.ne.s32.totalorder %s274, %s288
      %p290 = scmp.eq.s32.totalorder %s44, 0
      %p291 = por %p289, %p290
      %s293 = sadd.s32 %s292, 1
      %p296 = scmp.eq.s32.totalorder %s38, 1
      %p297 = scmp.ne.s32.totalorder %s292, %s294
      %p298 = scmp.eq.s32.totalorder %s38, 0
      %p299 = por %p297, %p298
      %p300 = scmp.ne.s32.totalorder %s292, %s294
      %p301 = scmp.eq.s32.totalorder %s43, 1
      %p302 = por %p300, %p301
      %p303 = scmp.ne.s32.totalorder %s294, %s295
      %p304 = scmp.eq.s32.totalorder %s43, 0
      %p305 = por %p303, %p304
      %p306 = scmp.ne.s32.totalorder %s294, %s295
      %p307 = scmp.eq.s32.totalorder %s44, 1
      %p308 = por %p306, %p307
      %p310 = scmp.ne.s32.totalorder %s295, %s309
      %p311 = scmp.eq.s32.totalorder %s44, 0
      %p312 = por %p310, %p311
      %s314 = sadd.s32 %s313, 1
      %p317 = scmp.eq.s32.totalorder %s38, 1
      %p318 = scmp.ne.s32.totalorder %s313, %s315
      %p319 = scmp.eq.s32.totalorder %s38, 0
      %p320 = por %p318, %p319
      %p321 = scmp.ne.s32.totalorder %s313, %s315
      %p322 = scmp.eq.s32.totalorder %s43, 1
      %p323 = por %p321, %p322
      %p324 = scmp.ne.s32.totalorder %s315, %s316
      %p325 = scmp.eq.s32.totalorder %s43, 0
      %p326 = por %p324, %p325
      %p327 = scmp.ne.s32.totalorder %s315, %s316
      %p328 = scmp.eq.s32.totalorder %s44, 1
      %p329 = por %p327, %p328
      %p331 = scmp.ne.s32.totalorder %s316, %s330
      %p332 = scmp.eq.s32.totalorder %s44, 0
      %p333 = por %p331, %p332
      %s335 = sadd.s32 %s334, 1
      %p338 = scmp.eq.s32.totalorder %s38, 1
      %p339 = scmp.ne.s32.totalorder %s334, %s336
      %p340 = scmp.eq.s32.totalorder %s38, 0
      %p341 = por %p339, %p340
      %p342 = scmp.ne.s32.totalorder %s334, %s336
      %p343 = scmp.eq.s32.totalorder %s43, 1
      %p344 = por %p342, %p343
      %p345 = scmp.ne.s32.totalorder %s336, %s337
      %p346 = scmp.eq.s32.totalorder %s43, 0
      %p347 = por %p345, %p346
      %p348 = scmp.ne.s32.totalorder %s336, %s337
      %p349 = scmp.eq.s32.totalorder %s44, 1
      %p350 = por %p348, %p349
      %p352 = scmp.ne.s32.totalorder %s337, %s351
      %p353 = scmp.eq.s32.totalorder %s44, 0
      %p354 = por %p352, %p353
      %s356 = sadd.s32 %s355, 1
      %p359 = scmp.eq.s32.totalorder %s38, 1
      %p360 = scmp.ne.s32.totalorder %s355, %s357
      %p361 = scmp.eq.s32.totalorder %s38, 0
      %p362 = por %p360, %p361
      %p363 = scmp.ne.s32.totalorder %s355, %s357
      %p364 = scmp.eq.s32.totalorder %s43, 1
      %p365 = por %p363, %p364
      %p366 = scmp.ne.s32.totalorder %s357, %s358
      %p367 = scmp.eq.s32.totalorder %s43, 0
      %p368 = por %p366, %p367
      %p369 = scmp.ne.s32.totalorder %s357, %s358
      %p370 = scmp.eq.s32.totalorder %s44, 1
      %p371 = por %p369, %p370
      %p373 = scmp.ne.s32.totalorder %s358, %s372
      %p374 = scmp.eq.s32.totalorder %s44, 0
      %p375 = por %p373, %p374
      %s377 = sadd.s32 %s376, 1
      %p380 = scmp.eq.s32.totalorder %s38, 1
      %p381 = scmp.ne.s32.totalorder %s376, %s378
      %p382 = scmp.eq.s32.totalorder %s38, 0
      %p383 = por %p381, %p382
      %p384 = scmp.ne.s32.totalorder %s376, %s378
      %p385 = scmp.eq.s32.totalorder %s43, 1
      %p386 = por %p384, %p385
      %p387 = scmp.ne.s32.totalorder %s378, %s379
      %p388 = scmp.eq.s32.totalorder %s43, 0
      %p389 = por %p387, %p388
      %p390 = scmp.ne.s32.totalorder %s378, %s379
      %p391 = scmp.eq.s32.totalorder %s44, 1
      %p392 = por %p390, %p391
      %p394 = scmp.ne.s32.totalorder %s379, %s393
      %p395 = scmp.eq.s32.totalorder %s44, 0
      %p396 = por %p394, %p395
      %s398 = sadd.s32 %s397, 1
      %p401 = scmp.eq.s32.totalorder %s38, 1
      %p402 = scmp.ne.s32.totalorder %s397, %s399
      %p403 = scmp.eq.s32.totalorder %s38, 0
      %p404 = por %p402, %p403
      %p405 = scmp.ne.s32.totalorder %s397, %s399
      %p406 = scmp.eq.s32.totalorder %s43, 1
      %p407 = por %p405, %p406
      %p408 = scmp.ne.s32.totalorder %s399, %s400
      %p409 = scmp.eq.s32.totalorder %s43, 0
      %p410 = por %p408, %p409
      %p411 = scmp.ne.s32.totalorder %s399, %s400
      %p412 = scmp.eq.s32.totalorder %s44, 1
      %p413 = por %p411, %p412
      %p415 = scmp.ne.s32.totalorder %s400, %s414
      %p416 = scmp.eq.s32.totalorder %s44, 0
      %p417 = por %p415, %p416
      %s419 = sadd.s32 %s418, 1
      %p422 = scmp.eq.s32.totalorder %s38, 1
      %p423 = scmp.ne.s32.totalorder %s418, %s420
      %p424 = scmp.eq.s32.totalorder %s38, 0
      %p425 = por %p423, %p424
      %p426 = scmp.ne.s32.totalorder %s418, %s420
      %p427 = scmp.eq.s32.totalorder %s43, 1
      %p428 = por %p426, %p427
      %p429 = scmp.ne.s32.totalorder %s420, %s421
      %p430 = scmp.eq.s32.totalorder %s43, 0
      %p431 = por %p429, %p430
      %p432 = scmp.ne.s32.totalorder %s420, %s421
      %p433 = scmp.eq.s32.totalorder %s44, 1
      %p434 = por %p432, %p433
      %p436 = scmp.ne.s32.totalorder %s421, %s435
      %p437 = scmp.eq.s32.totalorder %s44, 0
      %p438 = por %p436, %p437
      %s440 = sadd.s32 %s439, 1
      %p443 = scmp.eq.s32.totalorder %s38, 1
      %p444 = scmp.ne.s32.totalorder %s439, %s441
      %p445 = scmp.eq.s32.totalorder %s38, 0
      %p446 = por %p444, %p445
      %p447 = scmp.ne.s32.totalorder %s439, %s441
      %p448 = scmp.eq.s32.totalorder %s43, 1
      %p449 = por %p447, %p448
      %p450 = scmp.ne.s32.totalorder %s441, %s442
      %p451 = scmp.eq.s32.totalorder %s43, 0
      %p452 = por %p450, %p451
      %p453 = scmp.ne.s32.totalorder %s441, %s442
      %p454 = scmp.eq.s32.totalorder %s44, 1
      %p455 = por %p453, %p454
      %p457 = scmp.ne.s32.totalorder %s442, %s456
      %p458 = scmp.eq.s32.totalorder %s44, 0
      %p459 = por %p457, %p458
      %s461 = sadd.s32 %s460, 1
      %p464 = scmp.eq.s32.totalorder %s38, 1
      %p465 = scmp.ne.s32.totalorder %s460, %s462
      %p466 = scmp.eq.s32.totalorder %s38, 0
      %p467 = por %p465, %p466
      %p468 = scmp.ne.s32.totalorder %s460, %s462
      %p469 = scmp.eq.s32.totalorder %s43, 1
      %p470 = por %p468, %p469
      %p471 = scmp.ne.s32.totalorder %s462, %s463
      %p472 = scmp.eq.s32.totalorder %s43, 0
      %p473 = por %p471, %p472
      %p474 = scmp.ne.s32.totalorder %s462, %s463
      %p475 = scmp.eq.s32.totalorder %s44, 1
      %p476 = por %p474, %p475
      %p478 = scmp.ne.s32.totalorder %s463, %s477
      %p479 = scmp.eq.s32.totalorder %s44, 0
      %p480 = por %p478, %p479
      %s481 = ssub.s32 %s38, %s45
      %p482 = scmp.eq.s32.totalorder %s481, 0
      %s484 = sadd.s32 %s483, 1
      %s485 = scalar_select %p482, %s483, %s484
      %p488 = pneg %p482
      %p489 = scmp.eq.s32.totalorder %s38, 1
      %p490 = por %p488, %p489
      %p491 = scmp.ne.s32.totalorder %s483, %s486
      %p492 = scmp.eq.s32.totalorder %s38, 0
      %p493 = por %p491, %p492
      %p494 = scmp.ne.s32.totalorder %s483, %s486
      %p495 = scmp.eq.s32.totalorder %s43, 1
      %p496 = por %p494, %p495
      %p497 = scmp.ne.s32.totalorder %s486, %s487
      %p498 = scmp.eq.s32.totalorder %s43, 0
      %p499 = por %p497, %p498
      %p500 = scmp.ne.s32.totalorder %s486, %s487
      %p501 = scmp.eq.s32.totalorder %s44, 1
      %p502 = por %p500, %p501
      %p504 = scmp.ne.s32.totalorder %s487, %s503
      %p505 = scmp.eq.s32.totalorder %s44, 0
      %p506 = por %p504, %p505
      %p507 = scmp.le.s32.totalorder 1, %s38
      %p508 = scmp.lt.s32.totalorder %s38, 3
      %p509 = pnand %p507, %p508
      %p510 = pneg %p509
      // Predicated region
      $region9: #{tpu_custom_call.1} parent=5 // pred_check
        _
      $region10: #{tpu_custom_call.1} parent=5 // pred_check_branch
        %512 = sbr.rel (%p509) target = $region12
      $region11: #{tpu_custom_call.1} parent=5 // pred_region
        %s513 = ssub.s32 %s38, 1
        // Predicated region
        $region13: #{tpu_custom_call.1} parent=11 // pred_check
          %p514 = pneg %p137
        $region14: #{tpu_custom_call.1} parent=11 // pred_check_branch
          %516 = sbr.rel (%p514) target = $region16
        $region15: #{tpu_custom_call.1} parent=11 // pred_region
          _
        $region16: #{tpu_custom_call.1} parent=11 // pred_fallthru
          _
        // Predicated region
        $region17: #{tpu_custom_call.1} parent=11 // pred_check
          %p517 = pneg %p158
        $region18: #{tpu_custom_call.1} parent=11 // pred_check_branch
          %519 = sbr.rel (%p517) target = $region20
        $region19: #{tpu_custom_call.1} parent=11 // pred_region
          _
        $region20: #{tpu_custom_call.1} parent=11 // pred_fallthru
          _
        // Predicated region
        $region21: #{tpu_custom_call.1} parent=11 // pred_check
          %p520 = pneg %p179
        $region22: #{tpu_custom_call.1} parent=11 // pred_check_branch
          %522 = sbr.rel (%p520) target = $region24
        $region23: #{tpu_custom_call.1} parent=11 // pred_region
          _
        $region24: #{tpu_custom_call.1} parent=11 // pred_fallthru
          _
        // Predicated region
        $region25: #{tpu_custom_call.1} parent=11 // pred_check
          %p523 = pneg %p200
        $region26: #{tpu_custom_call.1} parent=11 // pred_check_branch
          %525 = sbr.rel (%p523) target = $region28
        $region27: #{tpu_custom_call.1} parent=11 // pred_region
          %s527 = ssub.s32 2048, 2048
          %528 = vsyncadd [#allocation9], %s527
          %s529 = sshll.u32 [#allocation8], 4
          %s530 = int_to_ptr.vmem [resolvable:$true] %s529
          %535 = dma.hbm_to_vmem [thread:$0]  %s6, 2048, %s530, [#allocation9], 128, 128, 8
        $region28: #{tpu_custom_call.1} parent=11 // pred_fallthru
          _
        // Predicated region
        $region29: #{tpu_custom_call.1} parent=11 // pred_check
          %p536 = pneg %p221
        $region30: #{tpu_custom_call.1} parent=11 // pred_check_branch
          %538 = sbr.rel (%p536) target = $region32
        $region31: #{tpu_custom_call.1} parent=11 // pred_region
          %s540 = ssub.s32 2048, 2048
          %541 = vsyncadd [#allocation9], %s540
          %s542 = sshll.u32 [#allocation10], 4
          %s543 = int_to_ptr.vmem [resolvable:$true] %s542
          %548 = dma.hbm_to_vmem [thread:$0]  %s7, 2048, %s543, [#allocation9], 128, 128, 8
        $region32: #{tpu_custom_call.1} parent=11 // pred_fallthru
          _
        // Predicated region
        $region33: #{tpu_custom_call.1} parent=11 // pred_check
          %p549 = pneg %p242
        $region34: #{tpu_custom_call.1} parent=11 // pred_check_branch
          %551 = sbr.rel (%p549) target = $region36
        $region35: #{tpu_custom_call.1} parent=11 // pred_region
          _
        $region36: #{tpu_custom_call.1} parent=11 // pred_fallthru
          _
        // Predicated region
        $region37: #{tpu_custom_call.1} parent=11 // pred_check
          %p552 = pneg %p263
        $region38: #{tpu_custom_call.1} parent=11 // pred_check_branch
          %554 = sbr.rel (%p552) target = $region40
        $region39: #{tpu_custom_call.1} parent=11 // pred_region
          %s556 = ssub.s32 2048, 2048
          %557 = vsyncadd [#allocation12], %s556
          %s558 = sshll.u32 [#allocation11], 4
          %s559 = int_to_ptr.vmem [resolvable:$true] %s558
          %564 = dma.hbm_to_vmem [thread:$0]  %s9, 2048, %s559, [#allocation12], 128, 128, 8
        $region40: #{tpu_custom_call.1} parent=11 // pred_fallthru
          _
        // Predicated region
        $region41: #{tpu_custom_call.1} parent=11 // pred_check
          %p565 = pneg %p284
        $region42: #{tpu_custom_call.1} parent=11 // pred_check_branch
          %567 = sbr.rel (%p565) target = $region44
        $region43: #{tpu_custom_call.1} parent=11 // pred_region
          %s569 = ssub.s32 2048, 2048
          %570 = vsyncadd [#allocation12], %s569
          %s571 = sshll.u32 [#allocation13], 4
          %s572 = int_to_ptr.vmem [resolvable:$true] %s571
          %577 = dma.hbm_to_vmem [thread:$0]  %s10, 2048, %s572, [#allocation12], 128, 128, 8
        $region44: #{tpu_custom_call.1} parent=11 // pred_fallthru
          _
        // Predicated region
        $region45: #{tpu_custom_call.1} parent=11 // pred_check
          %p578 = pneg %p305
        $region46: #{tpu_custom_call.1} parent=11 // pred_check_branch
          %580 = sbr.rel (%p578) target = $region48
        $region47: #{tpu_custom_call.1} parent=11 // pred_region
          %s582 = ssub.s32 2048, 2048
          %583 = vsyncadd [#allocation15], %s582
          %s584 = sshll.u32 [#allocation14], 4
          %s585 = int_to_ptr.vmem [resolvable:$true] %s584
          %590 = dma.hbm_to_vmem [thread:$0]  %s11, 2048, %s585, [#allocation15], 128, 128, 8
        $region48: #{tpu_custom_call.1} parent=11 // pred_fallthru
          _
        // Predicated region
        $region49: #{tpu_custom_call.1} parent=11 // pred_check
          %p591 = pneg %p326
        $region50: #{tpu_custom_call.1} parent=11 // pred_check_branch
          %593 = sbr.rel (%p591) target = $region52
        $region51: #{tpu_custom_call.1} parent=11 // pred_region
          _
        $region52: #{tpu_custom_call.1} parent=11 // pred_fallthru
          _
        // Predicated region
        $region53: #{tpu_custom_call.1} parent=11 // pred_check
          %p594 = pneg %p347
        $region54: #{tpu_custom_call.1} parent=11 // pred_check_branch
          %596 = sbr.rel (%p594) target = $region56
        $region55: #{tpu_custom_call.1} parent=11 // pred_region
          _
        $region56: #{tpu_custom_call.1} parent=11 // pred_fallthru
          _
        // Predicated region
        $region57: #{tpu_custom_call.1} parent=11 // pred_check
          %p597 = pneg %p368
        $region58: #{tpu_custom_call.1} parent=11 // pred_check_branch
          %599 = sbr.rel (%p597) target = $region60
        $region59: #{tpu_custom_call.1} parent=11 // pred_region
          _
        $region60: #{tpu_custom_call.1} parent=11 // pred_fallthru
          _
        // Predicated region
        $region61: #{tpu_custom_call.1} parent=11 // pred_check
          %p600 = pneg %p389
        $region62: #{tpu_custom_call.1} parent=11 // pred_check_branch
          %602 = sbr.rel (%p600) target = $region64
        $region63: #{tpu_custom_call.1} parent=11 // pred_region
          %s604 = ssub.s32 2048, 2048
          %605 = vsyncadd [#allocation15], %s604
          %s606 = sshll.u32 [#allocation16], 4
          %s607 = int_to_ptr.vmem [resolvable:$true] %s606
          %612 = dma.hbm_to_vmem [thread:$0]  %s15, 2048, %s607, [#allocation15], 128, 128, 8
        $region64: #{tpu_custom_call.1} parent=11 // pred_fallthru
          _
        // Predicated region
        $region65: #{tpu_custom_call.1} parent=11 // pred_check
          %p613 = pneg %p410
        $region66: #{tpu_custom_call.1} parent=11 // pred_check_branch
          %615 = sbr.rel (%p613) target = $region68
        $region67: #{tpu_custom_call.1} parent=11 // pred_region
          _
        $region68: #{tpu_custom_call.1} parent=11 // pred_fallthru
          _
        // Predicated region
        $region69: #{tpu_custom_call.1} parent=11 // pred_check
          %p616 = pneg %p431
        $region70: #{tpu_custom_call.1} parent=11 // pred_check_branch
          %618 = sbr.rel (%p616) target = $region72
        $region71: #{tpu_custom_call.1} parent=11 // pred_region
          %s620 = ssub.s32 2048, 2048
          %621 = vsyncadd [#allocation18], %s620
          %s622 = sshll.u32 [#allocation17], 4
          %s623 = int_to_ptr.vmem [resolvable:$true] %s622
          %628 = dma.hbm_to_vmem [thread:$0]  %s17, 2048, %s623, [#allocation18], 128, 128, 8
        $region72: #{tpu_custom_call.1} parent=11 // pred_fallthru
          _
        // Predicated region
        $region73: #{tpu_custom_call.1} parent=11 // pred_check
          %p629 = pneg %p452
        $region74: #{tpu_custom_call.1} parent=11 // pred_check_branch
          %631 = sbr.rel (%p629) target = $region76
        $region75: #{tpu_custom_call.1} parent=11 // pred_region
          _
        $region76: #{tpu_custom_call.1} parent=11 // pred_fallthru
          _
      $region12: #{tpu_custom_call.1} parent=5 // pred_fallthru
        _
      %p632 = scmp.lt.s32.totalorder %s38, 2
      // Predicated region
      $region77: #{tpu_custom_call.1} parent=5 // pred_check
        %p633 = pneg %p632
      $region78: #{tpu_custom_call.1} parent=5 // pred_check_branch
        %635 = sbr.rel (%p633) target = $region80
      $region79: #{tpu_custom_call.1} parent=5 // pred_region
        // Predicated region
        $region81: #{tpu_custom_call.1} parent=79 // pred_check
          %p636 = pneg %p58
        $region82: #{tpu_custom_call.1} parent=79 // pred_check_branch
          %638 = sbr.rel (%p636) target = $region84
        $region83: #{tpu_custom_call.1} parent=79 // pred_region
          %s639 = smul.u32 4, %s38
          %p640 = scmp.lt.s32.totalorder %s639, 7
          %s641 = scalar_select %p640, %s639, 7
          %s642 = smul.addr %s641, 8
          %s643 = scalar_lea.vmem %s0, %s642
          %s644 = smul.u32 4, %s38
        $region84: #{tpu_custom_call.1} parent=79 // pred_fallthru
          _
        // Predicated region
        $region85: #{tpu_custom_call.1} parent=79 // pred_check
          %p645 = pneg %p84
        $region86: #{tpu_custom_call.1} parent=79 // pred_check_branch
          %647 = sbr.rel (%p645) target = $region88
        $region87: #{tpu_custom_call.1} parent=79 // pred_region
          %s648 = smul.u32 4, %s38
          %p649 = scmp.lt.s32.totalorder %s648, 7
          %s650 = scalar_select %p649, %s648, 7
          %s651 = smul.addr %s650, 8
          %s652 = scalar_lea.vmem %s1, %s651
          %s653 = smul.u32 4, %s38
        $region88: #{tpu_custom_call.1} parent=79 // pred_fallthru
          _
        // Predicated region
        $region89: #{tpu_custom_call.1} parent=79 // pred_check
          %p654 = pneg %p110
        $region90: #{tpu_custom_call.1} parent=79 // pred_check_branch
          %656 = sbr.rel (%p654) target = $region92
        $region91: #{tpu_custom_call.1} parent=79 // pred_region
          %s657 = sand.u32 %s100, 1
          %s658 = scalar_lea.sflag [#allocation6], %s657
          %s659 = sand.u32 %s100, 1
          %s660 = smul.addr %s659, 32
          %s661 = scalar_lea.vmem [#allocation5], %s660
          %s662 = smul.u32 4, %s38
          %s664 = ssub.s32 512, 512
          %665 = vsyncadd %s658, %s664
          %s666 = smul.addr %s662, 128
          %s667 = scalar_lea.hbm %s2, %s666
          %s668 = sshll.u32 %s661, 4
          %s669 = int_to_ptr.vmem [resolvable:$true] %s668
          %674 = dma.hbm_to_vmem [thread:$0]  %s667, 512, %s669, %s658, 128, 128, 8
        $region92: #{tpu_custom_call.1} parent=79 // pred_fallthru
          _
      $region80: #{tpu_custom_call.1} parent=5 // pred_fallthru
        _
      %p675 = scmp.le.s32.totalorder 1, %s38
      %p676 = scmp.lt.s32.totalorder %s38, 3
      %p677 = pnand %p675, %p676
      %p678 = pneg %p677
      // Predicated region
      $region93: #{tpu_custom_call.1} parent=5 // pred_check
        _
      $region94: #{tpu_custom_call.1} parent=5 // pred_check_branch
        %680 = sbr.rel (%p677) target = $region96
      $region95: #{tpu_custom_call.1} parent=5 // pred_region
        %s681 = ssub.s32 %s38, 1
        %s682 = sand.u32 %s103, 1
        %s683 = scalar_lea.sflag [#allocation6], %s682
        %s684 = sand.u32 %s103, 1
        %s685 = smul.addr %s684, 32
        %s686 = scalar_lea.vmem [#allocation5], %s685
        // Predicated region
        $region97: #{tpu_custom_call.1} parent=95 // pred_check
          %p687 = pneg %p116
        $region98: #{tpu_custom_call.1} parent=95 // pred_check_branch
          %689 = sbr.rel (%p687) target = $region100
        $region99: #{tpu_custom_call.1} parent=95 // pred_region
          %690 = dma.done %s683, 512
        $region100: #{tpu_custom_call.1} parent=95 // pred_fallthru
          _
        // Predicated region
        $region101: #{tpu_custom_call.1} parent=95 // pred_check
          %p691 = pneg %p200
        $region102: #{tpu_custom_call.1} parent=95 // pred_check_branch
          %693 = sbr.rel (%p691) target = $region104
        $region103: #{tpu_custom_call.1} parent=95 // pred_region
          %694 = dma.done [#allocation9], 2048
        $region104: #{tpu_custom_call.1} parent=95 // pred_fallthru
          _
        // Predicated region
        $region105: #{tpu_custom_call.1} parent=95 // pred_check
          %p695 = pneg %p221
        $region106: #{tpu_custom_call.1} parent=95 // pred_check_branch
          %697 = sbr.rel (%p695) target = $region108
        $region107: #{tpu_custom_call.1} parent=95 // pred_region
          %698 = dma.done [#allocation9], 2048
        $region108: #{tpu_custom_call.1} parent=95 // pred_fallthru
          _
        // Predicated region
        $region109: #{tpu_custom_call.1} parent=95 // pred_check
          %p699 = pneg %p263
        $region110: #{tpu_custom_call.1} parent=95 // pred_check_branch
          %701 = sbr.rel (%p699) target = $region112
        $region111: #{tpu_custom_call.1} parent=95 // pred_region
          %702 = dma.done [#allocation12], 2048
        $region112: #{tpu_custom_call.1} parent=95 // pred_fallthru
          _
        // Predicated region
        $region113: #{tpu_custom_call.1} parent=95 // pred_check
          %p703 = pneg %p284
        $region114: #{tpu_custom_call.1} parent=95 // pred_check_branch
          %705 = sbr.rel (%p703) target = $region116
        $region115: #{tpu_custom_call.1} parent=95 // pred_region
          %706 = dma.done [#allocation12], 2048
        $region116: #{tpu_custom_call.1} parent=95 // pred_fallthru
          _
        // Predicated region
        $region117: #{tpu_custom_call.1} parent=95 // pred_check
          %p707 = pneg %p305
        $region118: #{tpu_custom_call.1} parent=95 // pred_check_branch
          %709 = sbr.rel (%p707) target = $region120
        $region119: #{tpu_custom_call.1} parent=95 // pred_region
          %710 = dma.done [#allocation15], 2048
        $region120: #{tpu_custom_call.1} parent=95 // pred_fallthru
          _
        // Predicated region
        $region121: #{tpu_custom_call.1} parent=95 // pred_check
          %p711 = pneg %p389
        $region122: #{tpu_custom_call.1} parent=95 // pred_check_branch
          %713 = sbr.rel (%p711) target = $region124
        $region123: #{tpu_custom_call.1} parent=95 // pred_region
          %714 = dma.done [#allocation15], 2048
        $region124: #{tpu_custom_call.1} parent=95 // pred_fallthru
          _
        // Predicated region
        $region125: #{tpu_custom_call.1} parent=95 // pred_check
          %p715 = pneg %p431
        $region126: #{tpu_custom_call.1} parent=95 // pred_check_branch
          %717 = sbr.rel (%p715) target = $region128
        $region127: #{tpu_custom_call.1} parent=95 // pred_region
          %718 = dma.done [#allocation18], 2048
        $region128: #{tpu_custom_call.1} parent=95 // pred_fallthru
          _
        %s719 = smul.u32 4, %s43
        %p720 = scmp.lt.s32.totalorder %s719, 7
        %s721 = scalar_select %p720, %s719, 7
        %s722 = smul.addr %s721, 8
        %s723 = scalar_lea.vmem %s0, %s722
        %p724 = pneg %p64
        %p725 = pneg %p61
        %s726 = smul.u32 4, %s43
        %p727 = scmp.lt.s32.totalorder %s726, 7
        %s728 = scalar_select %p727, %s726, 7
        %s729 = smul.addr %s728, 8
        %s730 = scalar_lea.vmem %s1, %s729
        %p731 = pneg %p90
        %p732 = pneg %p87
        %s733 = sand.u32 %s103, 1
        %s734 = scalar_lea.sflag [#allocation6], %s733
        %s735 = sand.u32 %s103, 1
        %s736 = smul.addr %s735, 32
        %s737 = scalar_lea.vmem [#allocation5], %s736
        %p738 = pneg %p116
        %p739 = pneg %p113
        %p740 = pneg %p137
        %p741 = pneg %p134
        %p742 = pneg %p158
        %p743 = pneg %p155
        %p744 = pneg %p179
        %p745 = pneg %p176
        %p746 = pneg %p200
        %p747 = pneg %p197
        %p748 = pneg %p221
        %p749 = pneg %p218
        %p750 = pneg %p242
        %p751 = pneg %p239
        %p752 = pneg %p263
        %p753 = pneg %p260
        %p754 = pneg %p284
        %p755 = pneg %p281
        %p756 = pneg %p305
        %p757 = pneg %p302
        %p758 = pneg %p326
        %p759 = pneg %p323
        %p760 = pneg %p347
        %p761 = pneg %p344
        %p762 = pneg %p368
        %p763 = pneg %p365
        %p764 = pneg %p389
        %p765 = pneg %p386
        %p766 = pneg %p410
        %p767 = pneg %p407
        %p768 = pneg %p431
        %p769 = pneg %p428
        %p770 = pneg %p452
        %p771 = pneg %p449
        %p772 = pneg %p473
        %p773 = pneg %p470
        %p774 = pneg %p499
        %p775 = pneg %p496
        %s776 = sand.u32 %s486, 1
        %s777 = scalar_lea.sflag [#allocation21], %s776
        %s778 = sand.u32 %s486, 1
        %s779 = smul.addr %s778, 32
        %s780 = scalar_lea.vmem [#allocation20], %s779
        %s781 = smul.u32 4, %s43
        %p782 = scmp.lt.s32.totalorder %s781, 7
        %s783 = scalar_select %p782, %s781, 7
        %s784 = smul.addr %s783, 8
        %s785 = scalar_lea.vmem %s0, %s784
        %s786 = smul.u32 4, %s43
        %s787 = smul.u32 4, %s43
        %p788 = scmp.lt.s32.totalorder %s787, 7
        %s789 = scalar_select %p788, %s787, 7
        %s790 = smul.addr %s789, 8
        %s791 = scalar_lea.vmem %s1, %s790
        %s792 = smul.u32 4, %s43
        %s793 = smul.u32 4, %s43
        %s794 = smul.u32 4, %s43
        %p795 = scmp.eq.s32.totalorder %s43, 0
        // Predicated region
        $region129: #{tpu_custom_call.1} parent=95 // pred_check
          %p796 = pneg %p795
        $region130: #{tpu_custom_call.1} parent=95 // pred_check_branch
          %798 = sbr.rel (%p796) target = $region132
        $region131: #{tpu_custom_call.1} parent=95 // pred_region
          %v799 = vld [vmem:[%s3] sm:$0xff]
          %v800 = vld [vmem:[%s3 + $0x8] sm:$0xff]
          %v801 = vld [vmem:[%s3 + $0x10] sm:$0xff]
          %v802 = vld [vmem:[%s3 + $0x18] sm:$0xff]
          %v803 = vld [vmem:[%s5] sm:$0xff]
          %v804 = vld [vmem:[%s5 + $0x8] sm:$0xff]
          %v805 = vld [vmem:[%s5 + $0x10] sm:$0xff]
          %v806 = vld [vmem:[%s5 + $0x18] sm:$0xff]
          %v807 = vld [vmem:[%s5 + $0x20] sm:$0xff]
          %v808 = vld [vmem:[%s5 + $0x28] sm:$0xff]
          %v809 = vld [vmem:[%s5 + $0x30] sm:$0xff]
          %v810 = vld [vmem:[%s5 + $0x38] sm:$0xff]
          %v811 = vld [vmem:[%s5 + $0x40] sm:$0xff]
          %v812 = vld [vmem:[%s5 + $0x48] sm:$0xff]
          %v813 = vld [vmem:[%s5 + $0x50] sm:$0xff]
          %v814 = vld [vmem:[%s5 + $0x58] sm:$0xff]
          %v815 = vld [vmem:[%s5 + $0x60] sm:$0xff]
          %v816 = vld [vmem:[%s5 + $0x68] sm:$0xff]
          %v817 = vld [vmem:[%s5 + $0x70] sm:$0xff]
          %v818 = vld [vmem:[%s5 + $0x78] sm:$0xff]
          %819 = vmatprep.subr.mxu0 0.0
          %820 = vmatpush1.msra.mxu0 %v818
          %821 = vmatprep.subr.mxu0 0.0
          %822 = vmatpush1.msra.mxu0 %v817
          %823 = vmatprep.subr.mxu0 0.0
          %824 = vmatpush1.msra.mxu0 %v816
          %825 = vmatprep.subr.mxu0 0.0
          %826 = vmatpush1.msra.mxu0 %v815
          %827 = vmatprep.subr.mxu0 0.0
          %828 = vmatpush1.msra.mxu0 %v814
          %829 = vmatprep.subr.mxu0 0.0
          %830 = vmatpush1.msra.mxu0 %v813
          %831 = vmatprep.subr.mxu0 0.0
          %832 = vmatpush1.msra.mxu0 %v812
          %833 = vmatprep.subr.mxu0 0.0
          %834 = vmatpush1.msra.mxu0 %v811
          %835 = vmatprep.subr.mxu0 0.0
          %836 = vmatpush1.msra.mxu0 %v810
          %837 = vmatprep.subr.mxu0 0.0
          %838 = vmatpush1.msra.mxu0 %v809
          %839 = vmatprep.subr.mxu0 0.0
          %840 = vmatpush1.msra.mxu0 %v808
          %841 = vmatprep.subr.mxu0 0.0
          %842 = vmatpush1.msra.mxu0 %v807
          %843 = vmatprep.subr.mxu0 0.0
          %844 = vmatpush1.msra.mxu0 %v806
          %845 = vmatprep.subr.mxu0 0.0
          %846 = vmatpush1.msra.mxu0 %v805
          %847 = vmatprep.subr.mxu0 0.0
          %848 = vmatpush1.msra.mxu0 %v804
          %849 = vmatprep.subr.mxu0 0.0
          %850 = vmatpush1.msra.mxu0 %v803
          %851 = vmatprep.subr.mxu0 0.0
          %852 = vmatpush2.msra.mxu0 0.0
          %853 = vmatprep.subr.mxu0 0.0
          %854 = vmatpush2.msra.mxu0 0.0
          %855 = vmatprep.subr.mxu0 0.0
          %856 = vmatpush2.msra.mxu0 0.0
          %857 = vmatprep.subr.mxu0 0.0
          %858 = vmatpush2.msra.mxu0 0.0
          %859 = vmatprep.subr.mxu0 0.0
          %860 = vmatpush2.msra.mxu0 0.0
          %861 = vmatprep.subr.mxu0 0.0
          %862 = vmatpush2.msra.mxu0 0.0
          %863 = vmatprep.subr.mxu0 0.0
          %864 = vmatpush2.msra.mxu0 0.0
          %865 = vmatprep.subr.mxu0 0.0
          %866 = vmatpush2.msra.mxu0 0.0
          %867 = vmatprep.subr.mxu0 0.0
          %868 = vmatpush2.msra.mxu0 0.0
          %869 = vmatprep.subr.mxu0 0.0
          %870 = vmatpush2.msra.mxu0 0.0
          %871 = vmatprep.subr.mxu0 0.0
          %872 = vmatpush2.msra.mxu0 0.0
          %873 = vmatprep.subr.mxu0 0.0
          %874 = vmatpush2.msra.mxu0 0.0
          %875 = vmatprep.subr.mxu0 0.0
          %876 = vmatpush2.msra.mxu0 0.0
          %877 = vmatprep.subr.mxu0 0.0
          %878 = vmatpush2.msra.mxu0 0.0
          %879 = vmatprep.subr.mxu0 0.0
          %880 = vmatpush2.msra.mxu0 0.0
          %881 = vmatprep.subr.mxu0 0.0
          %882 = vmatpush2.msra.mxu0 0.0
          %883 = vmatprep.mubr.f32.mxu0 0.0
          %884 = vmatmul.mubr.f32.gmra.mxu0 %v799
          %v885 = vpop.f32.mrf.mxu0
          %v886 = vadd.f32 0.0, %v885
          %v887 = vpop.f32.mrf.mxu0
          %888 = vmatprep.mubr.f32.mxu0 0.0
          %889 = vmatmul.mubr.f32.gmra.mxu0 %v800
          %v890 = vpop.f32.mrf.mxu0
          %v891 = vadd.f32 0.0, %v890
          %v892 = vpop.f32.mrf.mxu0
          %893 = vmatprep.mubr.f32.mxu0 0.0
          %894 = vmatmul.mubr.f32.gmra.mxu0 %v801
          %v895 = vpop.f32.mrf.mxu0
          %v896 = vadd.f32 0.0, %v895
          %v897 = vpop.f32.mrf.mxu0
          %898 = vmatprep.mubr.f32.mxu0 0.0
          %899 = vmatmul.mubr.f32.gmra.mxu0 %v802
          %v900 = vpop.f32.mrf.mxu0
          %v901 = vadd.f32 0.0, %v900
          %v902 = vpop.f32.mrf.mxu0
          %903 = vdwg.mxu0
          %904 = vst [vmem:[#allocation2] sm:$0xff] %v886
          %905 = vst [vmem:[#allocation2 + $0x8] sm:$0xff] %v891
          %906 = vst [vmem:[#allocation2 + $0x10] sm:$0xff] %v896
          %907 = vst [vmem:[#allocation2 + $0x18] sm:$0xff] %v901
          %v908 = vld [vmem:[#allocation10] sm:$0xff]
          %v909 = vld [vmem:[#allocation10 + $0x8] sm:$0xff]
          %v910 = vld [vmem:[#allocation10 + $0x10] sm:$0xff]
          %v911 = vld [vmem:[#allocation10 + $0x18] sm:$0xff]
          %v912 = vld [vmem:[#allocation10 + $0x20] sm:$0xff]
          %v913 = vld [vmem:[#allocation10 + $0x28] sm:$0xff]
          %v914 = vld [vmem:[#allocation10 + $0x30] sm:$0xff]
          %v915 = vld [vmem:[#allocation10 + $0x38] sm:$0xff]
          %v916 = vld [vmem:[#allocation10 + $0x40] sm:$0xff]
          %v917 = vld [vmem:[#allocation10 + $0x48] sm:$0xff]
          %v918 = vld [vmem:[#allocation10 + $0x50] sm:$0xff]
          %v919 = vld [vmem:[#allocation10 + $0x58] sm:$0xff]
          %v920 = vld [vmem:[#allocation10 + $0x60] sm:$0xff]
          %v921 = vld [vmem:[#allocation10 + $0x68] sm:$0xff]
          %v922 = vld [vmem:[#allocation10 + $0x70] sm:$0xff]
          %v923 = vld [vmem:[#allocation10 + $0x78] sm:$0xff]
          %924 = vmatprep.subr.mxu0 0.0
          %925 = vmatpush1.msra.mxu0 %v923
          %926 = vmatprep.subr.mxu0 0.0
          %927 = vmatpush1.msra.mxu0 %v922
          %928 = vmatprep.subr.mxu0 0.0
          %929 = vmatpush1.msra.mxu0 %v921
          %930 = vmatprep.subr.mxu0 0.0
          %931 = vmatpush1.msra.mxu0 %v920
          %932 = vmatprep.subr.mxu0 0.0
          %933 = vmatpush1.msra.mxu0 %v919
          %934 = vmatprep.subr.mxu0 0.0
          %935 = vmatpush1.msra.mxu0 %v918
          %936 = vmatprep.subr.mxu0 0.0
          %937 = vmatpush1.msra.mxu0 %v917
          %938 = vmatprep.subr.mxu0 0.0
          %939 = vmatpush1.msra.mxu0 %v916
          %940 = vmatprep.subr.mxu0 0.0
          %941 = vmatpush1.msra.mxu0 %v915
          %942 = vmatprep.subr.mxu0 0.0
          %943 = vmatpush1.msra.mxu0 %v914
          %944 = vmatprep.subr.mxu0 0.0
          %945 = vmatpush1.msra.mxu0 %v913
          %946 = vmatprep.subr.mxu0 0.0
          %947 = vmatpush1.msra.mxu0 %v912
          %948 = vmatprep.subr.mxu0 0.0
          %949 = vmatpush1.msra.mxu0 %v911
          %950 = vmatprep.subr.mxu0 0.0
          %951 = vmatpush1.msra.mxu0 %v910
          %952 = vmatprep.subr.mxu0 0.0
          %953 = vmatpush1.msra.mxu0 %v909
          %954 = vmatprep.subr.mxu0 0.0
          %955 = vmatpush1.msra.mxu0 %v908
          %956 = vmatprep.subr.mxu0 0.0
          %957 = vmatpush2.msra.mxu0 0.0
          %958 = vmatprep.subr.mxu0 0.0
          %959 = vmatpush2.msra.mxu0 0.0
          %960 = vmatprep.subr.mxu0 0.0
          %961 = vmatpush2.msra.mxu0 0.0
          %962 = vmatprep.subr.mxu0 0.0
          %963 = vmatpush2.msra.mxu0 0.0
          %964 = vmatprep.subr.mxu0 0.0
          %965 = vmatpush2.msra.mxu0 0.0
          %966 = vmatprep.subr.mxu0 0.0
          %967 = vmatpush2.msra.mxu0 0.0
          %968 = vmatprep.subr.mxu0 0.0
          %969 = vmatpush2.msra.mxu0 0.0
          %970 = vmatprep.subr.mxu0 0.0
          %971 = vmatpush2.msra.mxu0 0.0
          %972 = vmatprep.subr.mxu0 0.0
          %973 = vmatpush2.msra.mxu0 0.0
          %974 = vmatprep.subr.mxu0 0.0
          %975 = vmatpush2.msra.mxu0 0.0
          %976 = vmatprep.subr.mxu0 0.0
          %977 = vmatpush2.msra.mxu0 0.0
          %978 = vmatprep.subr.mxu0 0.0
          %979 = vmatpush2.msra.mxu0 0.0
          %980 = vmatprep.subr.mxu0 0.0
          %981 = vmatpush2.msra.mxu0 0.0
          %982 = vmatprep.subr.mxu0 0.0
          %983 = vmatpush2.msra.mxu0 0.0
          %984 = vmatprep.subr.mxu0 0.0
          %985 = vmatpush2.msra.mxu0 0.0
          %986 = vmatprep.subr.mxu0 0.0
          %987 = vmatpush2.msra.mxu0 0.0
          %988 = vmatprep.mubr.f32.mxu0 0.0
          %989 = vmatmul.mubr.f32.gmra.mxu0 %v799
          %v990 = vpop.f32.mrf.mxu0
          %v991 = vadd.f32 0.0, %v990
          %v992 = vpop.f32.mrf.mxu0
          %993 = vmatprep.mubr.f32.mxu0 0.0
          %994 = vmatmul.mubr.f32.gmra.mxu0 %v800
          %v995 = vpop.f32.mrf.mxu0
          %v996 = vadd.f32 0.0, %v995
          %v997 = vpop.f32.mrf.mxu0
          %998 = vmatprep.mubr.f32.mxu0 0.0
          %999 = vmatmul.mubr.f32.gmra.mxu0 %v801
          %v1000 = vpop.f32.mrf.mxu0
          %v1001 = vadd.f32 0.0, %v1000
          %v1002 = vpop.f32.mrf.mxu0
          %1003 = vmatprep.mubr.f32.mxu0 0.0
          %1004 = vmatmul.mubr.f32.gmra.mxu0 %v802
          %v1005 = vpop.f32.mrf.mxu0
          %v1006 = vadd.f32 0.0, %v1005
          %v1007 = vpop.f32.mrf.mxu0
          %1008 = vdwg.mxu0
          %1009 = vst [vmem:[#allocation3] sm:$0xff] %v991
          %1010 = vst [vmem:[#allocation3 + $0x8] sm:$0xff] %v996
          %1011 = vst [vmem:[#allocation3 + $0x10] sm:$0xff] %v1001
          %1012 = vst [vmem:[#allocation3 + $0x18] sm:$0xff] %v1006
          %1013 = vst [vmem:[#allocation4] sm:$0xff] 0.0
          %1014 = vst [vmem:[#allocation4 + $0x8] sm:$0xff] 0.0
          %1015 = vst [vmem:[#allocation4 + $0x10] sm:$0xff] 0.0
          %1016 = vst [vmem:[#allocation4 + $0x18] sm:$0xff] 0.0
        $region132: #{tpu_custom_call.1} parent=95 // pred_fallthru
          _
        %v1017 = vlaneseq
        %v1018 = vand.u32 %v1017, 127
        %v1019 = vld [vmem:[%s785] sm:$0xff]
        %v1020 = vld [vmem:[%s785 + $0x8] sm:$0xff]
        %v1021 = vld [vmem:[%s785 + $0x10] sm:$0xff]
        %v1022 = vld [vmem:[%s785 + $0x18] sm:$0xff]
        %1023 = vset.pattern.permute.xlu0 0
        %1024 = vperm.xlu0 %1023, %v1019
        %v1025 = vpop.permute.xlu0 %1024
        %1026 = vset.pattern.permute.xlu0 0
        %1027 = vperm.xlu0 %1026, %v1020
        %v1028 = vpop.permute.xlu0 %1027
        %1029 = vset.pattern.permute.xlu0 0
        %1030 = vperm.xlu0 %1029, %v1021
        %v1031 = vpop.permute.xlu0 %1030
        %1032 = vset.pattern.permute.xlu0 0
        %1033 = vperm.xlu0 %1032, %v1022
        %v1034 = vpop.permute.xlu0 %1033
        %vm1035 = vcmp.eq.s32.totalorder %v1018, %v1025
        %vm1036 = vcmp.eq.s32.totalorder %v1018, %v1028
        %vm1037 = vcmp.eq.s32.totalorder %v1018, %v1031
        %vm1038 = vcmp.eq.s32.totalorder %v1018, %v1034
        %v1039 = vsel %vm1035, 1, 0
        %v1040 = vsel %vm1036, 1, 0
        %v1041 = vsel %vm1037, 1, 0
        %v1042 = vsel %vm1038, 1, 0
        %v1043 = vcvt.s32.f32 %v1039
        %v1044 = vcvt.s32.f32 %v1040
        %v1045 = vcvt.s32.f32 %v1041
        %v1046 = vcvt.s32.f32 %v1042
        %v1047 = vld [vmem:[%s791] sm:$0xff]
        %v1048 = vld [vmem:[%s791 + $0x8] sm:$0xff]
        %v1049 = vld [vmem:[%s791 + $0x10] sm:$0xff]
        %v1050 = vld [vmem:[%s791 + $0x18] sm:$0xff]
        %1051 = vset.pattern.permute.xlu0 0
        %1052 = vperm.xlu0 %1051, %v1047
        %v1053 = vpop.permute.xlu0 %1052
        %1054 = vset.pattern.permute.xlu0 0
        %1055 = vperm.xlu0 %1054, %v1048
        %v1056 = vpop.permute.xlu0 %1055
        %1057 = vset.pattern.permute.xlu0 0
        %1058 = vperm.xlu0 %1057, %v1049
        %v1059 = vpop.permute.xlu0 %1058
        %1060 = vset.pattern.permute.xlu0 0
        %1061 = vperm.xlu0 %1060, %v1050
        %v1062 = vpop.permute.xlu0 %1061
        %vm1063 = vcmp.eq.s32.totalorder %v1018, %v1053
        %vm1064 = vcmp.eq.s32.totalorder %v1018, %v1056
        %vm1065 = vcmp.eq.s32.totalorder %v1018, %v1059
        %vm1066 = vcmp.eq.s32.totalorder %v1018, %v1062
        %v1067 = vsel %vm1063, 1, 0
        %v1068 = vsel %vm1064, 1, 0
        %v1069 = vsel %vm1065, 1, 0
        %v1070 = vsel %vm1066, 1, 0
        %v1071 = vcvt.s32.f32 %v1067
        %v1072 = vcvt.s32.f32 %v1068
        %v1073 = vcvt.s32.f32 %v1069
        %v1074 = vcvt.s32.f32 %v1070
        %v1075 = vld [vmem:[#allocation2] sm:$0xff]
        %v1076 = vld [vmem:[#allocation2 + $0x8] sm:$0xff]
        %v1077 = vld [vmem:[#allocation2 + $0x10] sm:$0xff]
        %v1078 = vld [vmem:[#allocation2 + $0x18] sm:$0xff]
        %v1079 = vld [vmem:[#allocation3] sm:$0xff]
        %v1080 = vld [vmem:[#allocation3 + $0x8] sm:$0xff]
        %v1081 = vld [vmem:[#allocation3 + $0x10] sm:$0xff]
        %v1082 = vld [vmem:[#allocation3 + $0x18] sm:$0xff]
        %vm1083 = vcmask 261120
        %v1085 = vsel %vm1083, %v1071, 0
        %v1088 = vsel %vm1083, %v1072, 0
        %v1091 = vsel %vm1083, %v1073, 0
        %v1094 = vsel %vm1083, %v1074, 0
        %1096 = vmatprep.subr.mxu0 0.0
        %1097 = vmatpush1.msra.mxu0 0.0
        %1098 = vmatprep.subr.mxu0 0.0
        %1099 = vmatpush1.msra.mxu0 0.0
        %1100 = vmatprep.subr.mxu0 0.0
        %1101 = vmatpush1.msra.mxu0 0.0
        %1102 = vmatprep.subr.mxu0 0.0
        %1103 = vmatpush1.msra.mxu0 0.0
        %1104 = vmatprep.subr.mxu0 0.0
        %1105 = vmatpush1.msra.mxu0 0.0
        %1106 = vmatprep.subr.mxu0 0.0
        %1107 = vmatpush1.msra.mxu0 0.0
        %1108 = vmatprep.subr.mxu0 0.0
        %1109 = vmatpush1.msra.mxu0 0.0
        %1110 = vmatprep.subr.mxu0 0.0
        %1111 = vmatpush1.msra.mxu0 0.0
        %1112 = vmatprep.subr.mxu0 0.0
        %1113 = vmatpush1.msra.mxu0 0.0
        %1114 = vmatprep.subr.mxu0 0.0
        %1115 = vmatpush1.msra.mxu0 0.0
        %1116 = vmatprep.subr.mxu0 0.0
        %1117 = vmatpush1.msra.mxu0 0.0
        %1118 = vmatprep.subr.mxu0 0.0
        %1119 = vmatpush1.msra.mxu0 0.0
        %1120 = vmatprep.subr.mxu0 0.0
        %1121 = vmatpush1.msra.mxu0 %v1082
        %1122 = vmatprep.subr.mxu0 0.0
        %1123 = vmatpush1.msra.mxu0 %v1081
        %1124 = vmatprep.subr.mxu0 0.0
        %1125 = vmatpush1.msra.mxu0 %v1080
        %1126 = vmatprep.subr.mxu0 0.0
        %1127 = vmatpush1.msra.mxu0 %v1079
        %1128 = vmatprep.subr.mxu0 0.0
        %1129 = vmatpush2.msra.mxu0 0.0
        %1130 = vmatprep.subr.mxu0 0.0
        %1131 = vmatpush2.msra.mxu0 0.0
        %1132 = vmatprep.subr.mxu0 0.0
        %1133 = vmatpush2.msra.mxu0 0.0
        %1134 = vmatprep.subr.mxu0 0.0
        %1135 = vmatpush2.msra.mxu0 0.0
        %1136 = vmatprep.subr.mxu0 0.0
        %1137 = vmatpush2.msra.mxu0 0.0
        %1138 = vmatprep.subr.mxu0 0.0
        %1139 = vmatpush2.msra.mxu0 0.0
        %1140 = vmatprep.subr.mxu0 0.0
        %1141 = vmatpush2.msra.mxu0 0.0
        %1142 = vmatprep.subr.mxu0 0.0
        %1143 = vmatpush2.msra.mxu0 0.0
        %1144 = vmatprep.subr.mxu0 0.0
        %1145 = vmatpush2.msra.mxu0 0.0
        %1146 = vmatprep.subr.mxu0 0.0
        %1147 = vmatpush2.msra.mxu0 0.0
        %1148 = vmatprep.subr.mxu0 0.0
        %1149 = vmatpush2.msra.mxu0 0.0
        %1150 = vmatprep.subr.mxu0 0.0
        %1151 = vmatpush2.msra.mxu0 0.0
        %1152 = vmatprep.subr.mxu0 0.0
        %1153 = vmatpush2.msra.mxu0 0.0
        %1154 = vmatprep.subr.mxu0 0.0
        %1155 = vmatpush2.msra.mxu0 0.0
        %1156 = vmatprep.subr.mxu0 0.0
        %1157 = vmatpush2.msra.mxu0 0.0
        %1158 = vmatprep.subr.mxu0 0.0
        %1159 = vmatpush2.msra.mxu0 0.0
        %1160 = vmatprep.mubr.f32.mxu0 0.0
        %1161 = vmatmul.mubr.f32.gmra.mxu0 %v1085
        %v1162 = vpop.f32.mrf.mxu0
        %v1163 = vadd.f32 0.0, %v1162
        %v1164 = vpop.f32.mrf.mxu0
        %1165 = vmatprep.mubr.f32.mxu0 0.0
        %1166 = vmatmul.mubr.f32.gmra.mxu0 %v1088
        %v1167 = vpop.f32.mrf.mxu0
        %v1168 = vadd.f32 0.0, %v1167
        %v1169 = vpop.f32.mrf.mxu0
        %1170 = vmatprep.mubr.f32.mxu0 0.0
        %1171 = vmatmul.mubr.f32.gmra.mxu0 %v1091
        %v1172 = vpop.f32.mrf.mxu0
        %v1173 = vadd.f32 0.0, %v1172
        %v1174 = vpop.f32.mrf.mxu0
        %1175 = vmatprep.mubr.f32.mxu0 0.0
        %1176 = vmatmul.mubr.f32.gmra.mxu0 %v1094
        %v1177 = vpop.f32.mrf.mxu0
        %v1178 = vadd.f32 0.0, %v1177
        %v1179 = vpop.f32.mrf.mxu0
        %1180 = vdwg.mxu0
        %v1182 = vsel %vm1083, %v1043, 0
        %v1185 = vsel %vm1083, %v1044, 0
        %v1188 = vsel %vm1083, %v1045, 0
        %v1191 = vsel %vm1083, %v1046, 0
        %1193 = vmatprep.subr.mxu0 0.0
        %1194 = vmatpush1.msra.mxu0 0.0
        %1195 = vmatprep.subr.mxu0 0.0
        %1196 = vmatpush1.msra.mxu0 0.0
        %1197 = vmatprep.subr.mxu0 0.0
        %1198 = vmatpush1.msra.mxu0 0.0
        %1199 = vmatprep.subr.mxu0 0.0
        %1200 = vmatpush1.msra.mxu0 0.0
        %1201 = vmatprep.subr.mxu0 0.0
        %1202 = vmatpush1.msra.mxu0 0.0
        %1203 = vmatprep.subr.mxu0 0.0
        %1204 = vmatpush1.msra.mxu0 0.0
        %1205 = vmatprep.subr.mxu0 0.0
        %1206 = vmatpush1.msra.mxu0 0.0
        %1207 = vmatprep.subr.mxu0 0.0
        %1208 = vmatpush1.msra.mxu0 0.0
        %1209 = vmatprep.subr.mxu0 0.0
        %1210 = vmatpush1.msra.mxu0 0.0
        %1211 = vmatprep.subr.mxu0 0.0
        %1212 = vmatpush1.msra.mxu0 0.0
        %1213 = vmatprep.subr.mxu0 0.0
        %1214 = vmatpush1.msra.mxu0 0.0
        %1215 = vmatprep.subr.mxu0 0.0
        %1216 = vmatpush1.msra.mxu0 0.0
        %1217 = vmatprep.subr.mxu0 0.0
        %1218 = vmatpush1.msra.mxu0 %v1078
        %1219 = vmatprep.subr.mxu0 0.0
        %1220 = vmatpush1.msra.mxu0 %v1077
        %1221 = vmatprep.subr.mxu0 0.0
        %1222 = vmatpush1.msra.mxu0 %v1076
        %1223 = vmatprep.subr.mxu0 0.0
        %1224 = vmatpush1.msra.mxu0 %v1075
        %1225 = vmatprep.subr.mxu0 0.0
        %1226 = vmatpush2.msra.mxu0 0.0
        %1227 = vmatprep.subr.mxu0 0.0
        %1228 = vmatpush2.msra.mxu0 0.0
        %1229 = vmatprep.subr.mxu0 0.0
        %1230 = vmatpush2.msra.mxu0 0.0
        %1231 = vmatprep.subr.mxu0 0.0
        %1232 = vmatpush2.msra.mxu0 0.0
        %1233 = vmatprep.subr.mxu0 0.0
        %1234 = vmatpush2.msra.mxu0 0.0
        %1235 = vmatprep.subr.mxu0 0.0
        %1236 = vmatpush2.msra.mxu0 0.0
        %1237 = vmatprep.subr.mxu0 0.0
        %1238 = vmatpush2.msra.mxu0 0.0
        %1239 = vmatprep.subr.mxu0 0.0
        %1240 = vmatpush2.msra.mxu0 0.0
        %1241 = vmatprep.subr.mxu0 0.0
        %1242 = vmatpush2.msra.mxu0 0.0
        %1243 = vmatprep.subr.mxu0 0.0
        %1244 = vmatpush2.msra.mxu0 0.0
        %1245 = vmatprep.subr.mxu0 0.0
        %1246 = vmatpush2.msra.mxu0 0.0
        %1247 = vmatprep.subr.mxu0 0.0
        %1248 = vmatpush2.msra.mxu0 0.0
        %1249 = vmatprep.subr.mxu0 0.0
        %1250 = vmatpush2.msra.mxu0 0.0
        %1251 = vmatprep.subr.mxu0 0.0
        %1252 = vmatpush2.msra.mxu0 0.0
        %1253 = vmatprep.subr.mxu0 0.0
        %1254 = vmatpush2.msra.mxu0 0.0
        %1255 = vmatprep.subr.mxu0 0.0
        %1256 = vmatpush2.msra.mxu0 0.0
        %1257 = vmatprep.mubr.f32.mxu0 0.0
        %1258 = vmatmul.mubr.f32.gmra.mxu0 %v1182
        %v1259 = vpop.f32.mrf.mxu0
        %v1260 = vadd.f32 %v1163, %v1259
        %v1261 = vpop.f32.mrf.mxu0
        %1262 = vmatprep.mubr.f32.mxu0 0.0
        %1263 = vmatmul.mubr.f32.gmra.mxu0 %v1185
        %v1264 = vpop.f32.mrf.mxu0
        %v1265 = vadd.f32 %v1168, %v1264
        %v1266 = vpop.f32.mrf.mxu0
        %1267 = vmatprep.mubr.f32.mxu0 0.0
        %1268 = vmatmul.mubr.f32.gmra.mxu0 %v1188
        %v1269 = vpop.f32.mrf.mxu0
        %v1270 = vadd.f32 %v1173, %v1269
        %v1271 = vpop.f32.mrf.mxu0
        %1272 = vmatprep.mubr.f32.mxu0 0.0
        %1273 = vmatmul.mubr.f32.gmra.mxu0 %v1191
        %v1274 = vpop.f32.mrf.mxu0
        %v1275 = vadd.f32 %v1178, %v1274
        %v1276 = vpop.f32.mrf.mxu0
        %1277 = vdwg.mxu0
        %v1278 = vld [vmem:[%s686] sm:$0xff]
        %v1279 = vld [vmem:[%s686 + $0x8] sm:$0xff]
        %v1280 = vld [vmem:[%s686 + $0x10] sm:$0xff]
        %v1281 = vld [vmem:[%s686 + $0x18] sm:$0xff]
        %v1282 = vld [vmem:[#allocation8] sm:$0xff]
        %v1283 = vld [vmem:[#allocation8 + $0x8] sm:$0xff]
        %v1284 = vld [vmem:[#allocation8 + $0x10] sm:$0xff]
        %v1285 = vld [vmem:[#allocation8 + $0x18] sm:$0xff]
        %v1286 = vld [vmem:[#allocation8 + $0x20] sm:$0xff]
        %v1287 = vld [vmem:[#allocation8 + $0x28] sm:$0xff]
        %v1288 = vld [vmem:[#allocation8 + $0x30] sm:$0xff]
        %v1289 = vld [vmem:[#allocation8 + $0x38] sm:$0xff]
        %v1290 = vld [vmem:[#allocation8 + $0x40] sm:$0xff]
        %v1291 = vld [vmem:[#allocation8 + $0x48] sm:$0xff]
        %v1292 = vld [vmem:[#allocation8 + $0x50] sm:$0xff]
        %v1293 = vld [vmem:[#allocation8 + $0x58] sm:$0xff]
        %v1294 = vld [vmem:[#allocation8 + $0x60] sm:$0xff]
        %v1295 = vld [vmem:[#allocation8 + $0x68] sm:$0xff]
        %v1296 = vld [vmem:[#allocation8 + $0x70] sm:$0xff]
        %v1297 = vld [vmem:[#allocation8 + $0x78] sm:$0xff]
        %1298 = vmatprep.subr.mxu0 0.0
        %1299 = vmatpush1.msra.mxu0 %v1297
        %1300 = vmatprep.subr.mxu0 0.0
        %1301 = vmatpush1.msra.mxu0 %v1296
        %1302 = vmatprep.subr.mxu0 0.0
        %1303 = vmatpush1.msra.mxu0 %v1295
        %1304 = vmatprep.subr.mxu0 0.0
        %1305 = vmatpush1.msra.mxu0 %v1294
        %1306 = vmatprep.subr.mxu0 0.0
        %1307 = vmatpush1.msra.mxu0 %v1293
        %1308 = vmatprep.subr.mxu0 0.0
        %1309 = vmatpush1.msra.mxu0 %v1292
        %1310 = vmatprep.subr.mxu0 0.0
        %1311 = vmatpush1.msra.mxu0 %v1291
        %1312 = vmatprep.subr.mxu0 0.0
        %1313 = vmatpush1.msra.mxu0 %v1290
        %1314 = vmatprep.subr.mxu0 0.0
        %1315 = vmatpush1.msra.mxu0 %v1289
        %1316 = vmatprep.subr.mxu0 0.0
        %1317 = vmatpush1.msra.mxu0 %v1288
        %1318 = vmatprep.subr.mxu0 0.0
        %1319 = vmatpush1.msra.mxu0 %v1287
        %1320 = vmatprep.subr.mxu0 0.0
        %1321 = vmatpush1.msra.mxu0 %v1286
        %1322 = vmatprep.subr.mxu0 0.0
        %1323 = vmatpush1.msra.mxu0 %v1285
        %1324 = vmatprep.subr.mxu0 0.0
        %1325 = vmatpush1.msra.mxu0 %v1284
        %1326 = vmatprep.subr.mxu0 0.0
        %1327 = vmatpush1.msra.mxu0 %v1283
        %1328 = vmatprep.subr.mxu0 0.0
        %1329 = vmatpush1.msra.mxu0 %v1282
        %1330 = vmatprep.subr.mxu0 0.0
        %1331 = vmatpush2.msra.mxu0 0.0
        %1332 = vmatprep.subr.mxu0 0.0
        %1333 = vmatpush2.msra.mxu0 0.0
        %1334 = vmatprep.subr.mxu0 0.0
        %1335 = vmatpush2.msra.mxu0 0.0
        %1336 = vmatprep.subr.mxu0 0.0
        %1337 = vmatpush2.msra.mxu0 0.0
        %1338 = vmatprep.subr.mxu0 0.0
        %1339 = vmatpush2.msra.mxu0 0.0
        %1340 = vmatprep.subr.mxu0 0.0
        %1341 = vmatpush2.msra.mxu0 0.0
        %1342 = vmatprep.subr.mxu0 0.0
        %1343 = vmatpush2.msra.mxu0 0.0
        %1344 = vmatprep.subr.mxu0 0.0
        %1345 = vmatpush2.msra.mxu0 0.0
        %1346 = vmatprep.subr.mxu0 0.0
        %1347 = vmatpush2.msra.mxu0 0.0
        %1348 = vmatprep.subr.mxu0 0.0
        %1349 = vmatpush2.msra.mxu0 0.0
        %1350 = vmatprep.subr.mxu0 0.0
        %1351 = vmatpush2.msra.mxu0 0.0
        %1352 = vmatprep.subr.mxu0 0.0
        %1353 = vmatpush2.msra.mxu0 0.0
        %1354 = vmatprep.subr.mxu0 0.0
        %1355 = vmatpush2.msra.mxu0 0.0
        %1356 = vmatprep.subr.mxu0 0.0
        %1357 = vmatpush2.msra.mxu0 0.0
        %1358 = vmatprep.subr.mxu0 0.0
        %1359 = vmatpush2.msra.mxu0 0.0
        %1360 = vmatprep.subr.mxu0 0.0
        %1361 = vmatpush2.msra.mxu0 0.0
        %1362 = vmatprep.mubr.f32.mxu0 0.0
        %1363 = vmatmul.mubr.f32.gmra.mxu0 %v1278
        %v1364 = vpop.f32.mrf.mxu0
        %v1365 = vadd.f32 0.0, %v1364
        %v1366 = vpop.f32.mrf.mxu0
        %1367 = vmatprep.mubr.f32.mxu0 0.0
        %1368 = vmatmul.mubr.f32.gmra.mxu0 %v1279
        %v1369 = vpop.f32.mrf.mxu0
        %v1370 = vadd.f32 0.0, %v1369
        %v1371 = vpop.f32.mrf.mxu0
        %1372 = vmatprep.mubr.f32.mxu0 0.0
        %1373 = vmatmul.mubr.f32.gmra.mxu0 %v1280
        %v1374 = vpop.f32.mrf.mxu0
        %v1375 = vadd.f32 0.0, %v1374
        %v1376 = vpop.f32.mrf.mxu0
        %1377 = vmatprep.mubr.f32.mxu0 0.0
        %1378 = vmatmul.mubr.f32.gmra.mxu0 %v1281
        %v1379 = vpop.f32.mrf.mxu0
        %v1380 = vadd.f32 0.0, %v1379
        %v1381 = vpop.f32.mrf.mxu0
        %1382 = vdwg.mxu0
        %v1383 = vadd.f32 %v1260, %v1365
        %v1384 = vadd.f32 %v1265, %v1370
        %v1385 = vadd.f32 %v1270, %v1375
        %v1386 = vadd.f32 %v1275, %v1380
        %v1387 = vld [vmem:[%s8] sm:$0x1]
        %v1389 = vlaneseq
        %v1390 = vshrl.u32 %v1389, 7
        %v1391 = vsub.s32 0, %v1390
        %v1392 = vrot.slane %v1387, %v1391
        %v1394 = vadd.f32 %v1383, %v1392
        %v1395 = vadd.f32 %v1384, %v1392
        %v1396 = vadd.f32 %v1385, %v1392
        %v1397 = vadd.f32 %v1386, %v1392
        %v1398 = vmax.f32 %v1394, 0.0
        %v1399 = vmax.f32 %v1395, 0.0
        %v1400 = vmax.f32 %v1396, 0.0
        %v1401 = vmax.f32 %v1397, 0.0
        %v1402 = vld [vmem:[#allocation11] sm:$0xff]
        %v1403 = vld [vmem:[#allocation11 + $0x8] sm:$0xff]
        %v1404 = vld [vmem:[#allocation11 + $0x10] sm:$0xff]
        %v1405 = vld [vmem:[#allocation11 + $0x18] sm:$0xff]
        %v1406 = vld [vmem:[#allocation11 + $0x20] sm:$0xff]
        %v1407 = vld [vmem:[#allocation11 + $0x28] sm:$0xff]
        %v1408 = vld [vmem:[#allocation11 + $0x30] sm:$0xff]
        %v1409 = vld [vmem:[#allocation11 + $0x38] sm:$0xff]
        %v1410 = vld [vmem:[#allocation11 + $0x40] sm:$0xff]
        %v1411 = vld [vmem:[#allocation11 + $0x48] sm:$0xff]
        %v1412 = vld [vmem:[#allocation11 + $0x50] sm:$0xff]
        %v1413 = vld [vmem:[#allocation11 + $0x58] sm:$0xff]
        %v1414 = vld [vmem:[#allocation11 + $0x60] sm:$0xff]
        %v1415 = vld [vmem:[#allocation11 + $0x68] sm:$0xff]
        %v1416 = vld [vmem:[#allocation11 + $0x70] sm:$0xff]
        %v1417 = vld [vmem:[#allocation11 + $0x78] sm:$0xff]
        %v1418 = vld [vmem:[%s12] sm:$0x1]
        %v1420 = vlaneseq
        %v1421 = vshrl.u32 %v1420, 7
        %v1422 = vsub.s32 0, %v1421
        %v1423 = vrot.slane %v1418, %v1422
        %1425 = vmatprep.subr.mxu0 0.0
        %1426 = vmatpush1.msra.mxu0 %v1417
        %1427 = vmatprep.subr.mxu0 0.0
        %1428 = vmatpush1.msra.mxu0 %v1416
        %1429 = vmatprep.subr.mxu0 0.0
        %1430 = vmatpush1.msra.mxu0 %v1415
        %1431 = vmatprep.subr.mxu0 0.0
        %1432 = vmatpush1.msra.mxu0 %v1414
        %1433 = vmatprep.subr.mxu0 0.0
        %1434 = vmatpush1.msra.mxu0 %v1413
        %1435 = vmatprep.subr.mxu0 0.0
        %1436 = vmatpush1.msra.mxu0 %v1412
        %1437 = vmatprep.subr.mxu0 0.0
        %1438 = vmatpush1.msra.mxu0 %v1411
        %1439 = vmatprep.subr.mxu0 0.0
        %1440 = vmatpush1.msra.mxu0 %v1410
        %1441 = vmatprep.subr.mxu0 0.0
        %1442 = vmatpush1.msra.mxu0 %v1409
        %1443 = vmatprep.subr.mxu0 0.0
        %1444 = vmatpush1.msra.mxu0 %v1408
        %1445 = vmatprep.subr.mxu0 0.0
        %1446 = vmatpush1.msra.mxu0 %v1407
        %1447 = vmatprep.subr.mxu0 0.0
        %1448 = vmatpush1.msra.mxu0 %v1406
        %1449 = vmatprep.subr.mxu0 0.0
        %1450 = vmatpush1.msra.mxu0 %v1405
        %1451 = vmatprep.subr.mxu0 0.0
        %1452 = vmatpush1.msra.mxu0 %v1404
        %1453 = vmatprep.subr.mxu0 0.0
        %1454 = vmatpush1.msra.mxu0 %v1403
        %1455 = vmatprep.subr.mxu0 0.0
        %1456 = vmatpush1.msra.mxu0 %v1402
        %1457 = vmatprep.subr.mxu0 0.0
        %1458 = vmatpush2.msra.mxu0 0.0
        %1459 = vmatprep.subr.mxu0 0.0
        %1460 = vmatpush2.msra.mxu0 0.0
        %1461 = vmatprep.subr.mxu0 0.0
        %1462 = vmatpush2.msra.mxu0 0.0
        %1463 = vmatprep.subr.mxu0 0.0
        %1464 = vmatpush2.msra.mxu0 0.0
        %1465 = vmatprep.subr.mxu0 0.0
        %1466 = vmatpush2.msra.mxu0 0.0
        %1467 = vmatprep.subr.mxu0 0.0
        %1468 = vmatpush2.msra.mxu0 0.0
        %1469 = vmatprep.subr.mxu0 0.0
        %1470 = vmatpush2.msra.mxu0 0.0
        %1471 = vmatprep.subr.mxu0 0.0
        %1472 = vmatpush2.msra.mxu0 0.0
        %1473 = vmatprep.subr.mxu0 0.0
        %1474 = vmatpush2.msra.mxu0 0.0
        %1475 = vmatprep.subr.mxu0 0.0
        %1476 = vmatpush2.msra.mxu0 0.0
        %1477 = vmatprep.subr.mxu0 0.0
        %1478 = vmatpush2.msra.mxu0 0.0
        %1479 = vmatprep.subr.mxu0 0.0
        %1480 = vmatpush2.msra.mxu0 0.0
        %1481 = vmatprep.subr.mxu0 0.0
        %1482 = vmatpush2.msra.mxu0 0.0
        %1483 = vmatprep.subr.mxu0 0.0
        %1484 = vmatpush2.msra.mxu0 0.0
        %1485 = vmatprep.subr.mxu0 0.0
        %1486 = vmatpush2.msra.mxu0 0.0
        %1487 = vmatprep.subr.mxu0 0.0
        %1488 = vmatpush2.msra.mxu0 0.0
        %1489 = vmatprep.mubr.f32.mxu0 0.0
        %1490 = vmatmul.mubr.f32.gmra.mxu0 %v1398
        %v1491 = vpop.f32.mrf.mxu0
        %v1492 = vadd.f32 %v1423, %v1491
        %v1493 = vpop.f32.mrf.mxu0
        %1494 = vmatprep.mubr.f32.mxu0 0.0
        %1495 = vmatmul.mubr.f32.gmra.mxu0 %v1399
        %v1496 = vpop.f32.mrf.mxu0
        %v1497 = vadd.f32 %v1423, %v1496
        %v1498 = vpop.f32.mrf.mxu0
        %1499 = vmatprep.mubr.f32.mxu0 0.0
        %1500 = vmatmul.mubr.f32.gmra.mxu0 %v1400
        %v1501 = vpop.f32.mrf.mxu0
        %v1502 = vadd.f32 %v1423, %v1501
        %v1503 = vpop.f32.mrf.mxu0
        %1504 = vmatprep.mubr.f32.mxu0 0.0
        %1505 = vmatmul.mubr.f32.gmra.mxu0 %v1401
        %v1506 = vpop.f32.mrf.mxu0
        %v1507 = vadd.f32 %v1423, %v1506
        %v1508 = vpop.f32.mrf.mxu0
        %1509 = vdwg.mxu0
        %v1510 = vmax.f32 %v1492, 0.0
        %v1511 = vmax.f32 %v1497, 0.0
        %v1512 = vmax.f32 %v1502, 0.0
        %v1513 = vmax.f32 %v1507, 0.0
        %v1514 = vld [vmem:[#allocation13] sm:$0xff]
        %v1515 = vld [vmem:[#allocation13 + $0x8] sm:$0xff]
        %v1516 = vld [vmem:[#allocation13 + $0x10] sm:$0xff]
        %v1517 = vld [vmem:[#allocation13 + $0x18] sm:$0xff]
        %v1518 = vld [vmem:[#allocation13 + $0x20] sm:$0xff]
        %v1519 = vld [vmem:[#allocation13 + $0x28] sm:$0xff]
        %v1520 = vld [vmem:[#allocation13 + $0x30] sm:$0xff]
        %v1521 = vld [vmem:[#allocation13 + $0x38] sm:$0xff]
        %v1522 = vld [vmem:[#allocation13 + $0x40] sm:$0xff]
        %v1523 = vld [vmem:[#allocation13 + $0x48] sm:$0xff]
        %v1524 = vld [vmem:[#allocation13 + $0x50] sm:$0xff]
        %v1525 = vld [vmem:[#allocation13 + $0x58] sm:$0xff]
        %v1526 = vld [vmem:[#allocation13 + $0x60] sm:$0xff]
        %v1527 = vld [vmem:[#allocation13 + $0x68] sm:$0xff]
        %v1528 = vld [vmem:[#allocation13 + $0x70] sm:$0xff]
        %v1529 = vld [vmem:[#allocation13 + $0x78] sm:$0xff]
        %v1530 = vld [vmem:[%s13] sm:$0x1]
        %v1532 = vlaneseq
        %v1533 = vshrl.u32 %v1532, 7
        %v1534 = vsub.s32 0, %v1533
        %v1535 = vrot.slane %v1530, %v1534
        %1537 = vmatprep.subr.mxu0 0.0
        %1538 = vmatpush1.msra.mxu0 %v1529
        %1539 = vmatprep.subr.mxu0 0.0
        %1540 = vmatpush1.msra.mxu0 %v1528
        %1541 = vmatprep.subr.mxu0 0.0
        %1542 = vmatpush1.msra.mxu0 %v1527
        %1543 = vmatprep.subr.mxu0 0.0
        %1544 = vmatpush1.msra.mxu0 %v1526
        %1545 = vmatprep.subr.mxu0 0.0
        %1546 = vmatpush1.msra.mxu0 %v1525
        %1547 = vmatprep.subr.mxu0 0.0
        %1548 = vmatpush1.msra.mxu0 %v1524
        %1549 = vmatprep.subr.mxu0 0.0
        %1550 = vmatpush1.msra.mxu0 %v1523
        %1551 = vmatprep.subr.mxu0 0.0
        %1552 = vmatpush1.msra.mxu0 %v1522
        %1553 = vmatprep.subr.mxu0 0.0
        %1554 = vmatpush1.msra.mxu0 %v1521
        %1555 = vmatprep.subr.mxu0 0.0
        %1556 = vmatpush1.msra.mxu0 %v1520
        %1557 = vmatprep.subr.mxu0 0.0
        %1558 = vmatpush1.msra.mxu0 %v1519
        %1559 = vmatprep.subr.mxu0 0.0
        %1560 = vmatpush1.msra.mxu0 %v1518
        %1561 = vmatprep.subr.mxu0 0.0
        %1562 = vmatpush1.msra.mxu0 %v1517
        %1563 = vmatprep.subr.mxu0 0.0
        %1564 = vmatpush1.msra.mxu0 %v1516
        %1565 = vmatprep.subr.mxu0 0.0
        %1566 = vmatpush1.msra.mxu0 %v1515
        %1567 = vmatprep.subr.mxu0 0.0
        %1568 = vmatpush1.msra.mxu0 %v1514
        %1569 = vmatprep.subr.mxu0 0.0
        %1570 = vmatpush2.msra.mxu0 0.0
        %1571 = vmatprep.subr.mxu0 0.0
        %1572 = vmatpush2.msra.mxu0 0.0
        %1573 = vmatprep.subr.mxu0 0.0
        %1574 = vmatpush2.msra.mxu0 0.0
        %1575 = vmatprep.subr.mxu0 0.0
        %1576 = vmatpush2.msra.mxu0 0.0
        %1577 = vmatprep.subr.mxu0 0.0
        %1578 = vmatpush2.msra.mxu0 0.0
        %1579 = vmatprep.subr.mxu0 0.0
        %1580 = vmatpush2.msra.mxu0 0.0
        %1581 = vmatprep.subr.mxu0 0.0
        %1582 = vmatpush2.msra.mxu0 0.0
        %1583 = vmatprep.subr.mxu0 0.0
        %1584 = vmatpush2.msra.mxu0 0.0
        %1585 = vmatprep.subr.mxu0 0.0
        %1586 = vmatpush2.msra.mxu0 0.0
        %1587 = vmatprep.subr.mxu0 0.0
        %1588 = vmatpush2.msra.mxu0 0.0
        %1589 = vmatprep.subr.mxu0 0.0
        %1590 = vmatpush2.msra.mxu0 0.0
        %1591 = vmatprep.subr.mxu0 0.0
        %1592 = vmatpush2.msra.mxu0 0.0
        %1593 = vmatprep.subr.mxu0 0.0
        %1594 = vmatpush2.msra.mxu0 0.0
        %1595 = vmatprep.subr.mxu0 0.0
        %1596 = vmatpush2.msra.mxu0 0.0
        %1597 = vmatprep.subr.mxu0 0.0
        %1598 = vmatpush2.msra.mxu0 0.0
        %1599 = vmatprep.subr.mxu0 0.0
        %1600 = vmatpush2.msra.mxu0 0.0
        %1601 = vmatprep.mubr.f32.mxu0 0.0
        %1602 = vmatmul.mubr.f32.gmra.mxu0 %v1398
        %v1603 = vpop.f32.mrf.mxu0
        %v1604 = vadd.f32 %v1535, %v1603
        %v1605 = vpop.f32.mrf.mxu0
        %1606 = vmatprep.mubr.f32.mxu0 0.0
        %1607 = vmatmul.mubr.f32.gmra.mxu0 %v1399
        %v1608 = vpop.f32.mrf.mxu0
        %v1609 = vadd.f32 %v1535, %v1608
        %v1610 = vpop.f32.mrf.mxu0
        %1611 = vmatprep.mubr.f32.mxu0 0.0
        %1612 = vmatmul.mubr.f32.gmra.mxu0 %v1400
        %v1613 = vpop.f32.mrf.mxu0
        %v1614 = vadd.f32 %v1535, %v1613
        %v1615 = vpop.f32.mrf.mxu0
        %1616 = vmatprep.mubr.f32.mxu0 0.0
        %1617 = vmatmul.mubr.f32.gmra.mxu0 %v1401
        %v1618 = vpop.f32.mrf.mxu0
        %v1619 = vadd.f32 %v1535, %v1618
        %v1620 = vpop.f32.mrf.mxu0
        %1621 = vdwg.mxu0
        %v1622 = vmax.f32 %v1604, 0.0
        %v1623 = vmax.f32 %v1609, 0.0
        %v1624 = vmax.f32 %v1614, 0.0
        %v1625 = vmax.f32 %v1619, 0.0
        %v1626 = vld [vmem:[#allocation14] sm:$0xff]
        %v1627 = vld [vmem:[#allocation14 + $0x8] sm:$0xff]
        %v1628 = vld [vmem:[#allocation14 + $0x10] sm:$0xff]
        %v1629 = vld [vmem:[#allocation14 + $0x18] sm:$0xff]
        %v1630 = vld [vmem:[#allocation14 + $0x20] sm:$0xff]
        %v1631 = vld [vmem:[#allocation14 + $0x28] sm:$0xff]
        %v1632 = vld [vmem:[#allocation14 + $0x30] sm:$0xff]
        %v1633 = vld [vmem:[#allocation14 + $0x38] sm:$0xff]
        %v1634 = vld [vmem:[#allocation14 + $0x40] sm:$0xff]
        %v1635 = vld [vmem:[#allocation14 + $0x48] sm:$0xff]
        %v1636 = vld [vmem:[#allocation14 + $0x50] sm:$0xff]
        %v1637 = vld [vmem:[#allocation14 + $0x58] sm:$0xff]
        %v1638 = vld [vmem:[#allocation14 + $0x60] sm:$0xff]
        %v1639 = vld [vmem:[#allocation14 + $0x68] sm:$0xff]
        %v1640 = vld [vmem:[#allocation14 + $0x70] sm:$0xff]
        %v1641 = vld [vmem:[#allocation14 + $0x78] sm:$0xff]
        %v1642 = vld [vmem:[%s14] sm:$0x1]
        %v1644 = vlaneseq
        %v1645 = vshrl.u32 %v1644, 7
        %v1646 = vsub.s32 0, %v1645
        %v1647 = vrot.slane %v1642, %v1646
        %1649 = vmatprep.subr.mxu0 0.0
        %1650 = vmatpush1.msra.mxu0 %v1641
        %1651 = vmatprep.subr.mxu0 0.0
        %1652 = vmatpush1.msra.mxu0 %v1640
        %1653 = vmatprep.subr.mxu0 0.0
        %1654 = vmatpush1.msra.mxu0 %v1639
        %1655 = vmatprep.subr.mxu0 0.0
        %1656 = vmatpush1.msra.mxu0 %v1638
        %1657 = vmatprep.subr.mxu0 0.0
        %1658 = vmatpush1.msra.mxu0 %v1637
        %1659 = vmatprep.subr.mxu0 0.0
        %1660 = vmatpush1.msra.mxu0 %v1636
        %1661 = vmatprep.subr.mxu0 0.0
        %1662 = vmatpush1.msra.mxu0 %v1635
        %1663 = vmatprep.subr.mxu0 0.0
        %1664 = vmatpush1.msra.mxu0 %v1634
        %1665 = vmatprep.subr.mxu0 0.0
        %1666 = vmatpush1.msra.mxu0 %v1633
        %1667 = vmatprep.subr.mxu0 0.0
        %1668 = vmatpush1.msra.mxu0 %v1632
        %1669 = vmatprep.subr.mxu0 0.0
        %1670 = vmatpush1.msra.mxu0 %v1631
        %1671 = vmatprep.subr.mxu0 0.0
        %1672 = vmatpush1.msra.mxu0 %v1630
        %1673 = vmatprep.subr.mxu0 0.0
        %1674 = vmatpush1.msra.mxu0 %v1629
        %1675 = vmatprep.subr.mxu0 0.0
        %1676 = vmatpush1.msra.mxu0 %v1628
        %1677 = vmatprep.subr.mxu0 0.0
        %1678 = vmatpush1.msra.mxu0 %v1627
        %1679 = vmatprep.subr.mxu0 0.0
        %1680 = vmatpush1.msra.mxu0 %v1626
        %1681 = vmatprep.subr.mxu0 0.0
        %1682 = vmatpush2.msra.mxu0 0.0
        %1683 = vmatprep.subr.mxu0 0.0
        %1684 = vmatpush2.msra.mxu0 0.0
        %1685 = vmatprep.subr.mxu0 0.0
        %1686 = vmatpush2.msra.mxu0 0.0
        %1687 = vmatprep.subr.mxu0 0.0
        %1688 = vmatpush2.msra.mxu0 0.0
        %1689 = vmatprep.subr.mxu0 0.0
        %1690 = vmatpush2.msra.mxu0 0.0
        %1691 = vmatprep.subr.mxu0 0.0
        %1692 = vmatpush2.msra.mxu0 0.0
        %1693 = vmatprep.subr.mxu0 0.0
        %1694 = vmatpush2.msra.mxu0 0.0
        %1695 = vmatprep.subr.mxu0 0.0
        %1696 = vmatpush2.msra.mxu0 0.0
        %1697 = vmatprep.subr.mxu0 0.0
        %1698 = vmatpush2.msra.mxu0 0.0
        %1699 = vmatprep.subr.mxu0 0.0
        %1700 = vmatpush2.msra.mxu0 0.0
        %1701 = vmatprep.subr.mxu0 0.0
        %1702 = vmatpush2.msra.mxu0 0.0
        %1703 = vmatprep.subr.mxu0 0.0
        %1704 = vmatpush2.msra.mxu0 0.0
        %1705 = vmatprep.subr.mxu0 0.0
        %1706 = vmatpush2.msra.mxu0 0.0
        %1707 = vmatprep.subr.mxu0 0.0
        %1708 = vmatpush2.msra.mxu0 0.0
        %1709 = vmatprep.subr.mxu0 0.0
        %1710 = vmatpush2.msra.mxu0 0.0
        %1711 = vmatprep.subr.mxu0 0.0
        %1712 = vmatpush2.msra.mxu0 0.0
        %1713 = vmatprep.mubr.f32.mxu0 0.0
        %1714 = vmatmul.mubr.f32.gmra.mxu0 %v1398
        %v1715 = vpop.f32.mrf.mxu0
        %v1716 = vadd.f32 %v1647, %v1715
        %v1717 = vpop.f32.mrf.mxu0
        %1718 = vmatprep.mubr.f32.mxu0 0.0
        %1719 = vmatmul.mubr.f32.gmra.mxu0 %v1399
        %v1720 = vpop.f32.mrf.mxu0
        %v1721 = vadd.f32 %v1647, %v1720
        %v1722 = vpop.f32.mrf.mxu0
        %1723 = vmatprep.mubr.f32.mxu0 0.0
        %1724 = vmatmul.mubr.f32.gmra.mxu0 %v1400
        %v1725 = vpop.f32.mrf.mxu0
        %v1726 = vadd.f32 %v1647, %v1725
        %v1727 = vpop.f32.mrf.mxu0
        %1728 = vmatprep.mubr.f32.mxu0 0.0
        %1729 = vmatmul.mubr.f32.gmra.mxu0 %v1401
        %v1730 = vpop.f32.mrf.mxu0
        %v1731 = vadd.f32 %v1647, %v1730
        %v1732 = vpop.f32.mrf.mxu0
        %1733 = vdwg.mxu0
        %v1734 = vmax.f32 %v1716, 0.0
        %v1735 = vmax.f32 %v1721, 0.0
        %v1736 = vmax.f32 %v1726, 0.0
        %v1737 = vmax.f32 %v1731, 0.0
        %1738 = vst [vmem:[%s780] sm:$0xff] %v1622
        %1739 = vst [vmem:[%s780 + $0x8] sm:$0xff] %v1623
        %1740 = vst [vmem:[%s780 + $0x10] sm:$0xff] %v1624
        %1741 = vst [vmem:[%s780 + $0x18] sm:$0xff] %v1625
        %v1742 = vld [vmem:[#allocation4] sm:$0xff]
        %v1743 = vld [vmem:[#allocation4 + $0x8] sm:$0xff]
        %v1744 = vld [vmem:[#allocation4 + $0x10] sm:$0xff]
        %v1745 = vld [vmem:[#allocation4 + $0x18] sm:$0xff]
        %1746 = vxpose.xlu0.b32.start [1/16] %v1071, 128
        %1747 = vxpose.xlu0.b32.cont [2/16] %v1072, 128
        %1748 = vxpose.xlu0.b32.cont [3/16] %v1073, 128
        %1749 = vxpose.xlu0.b32.cont [4/16] %v1074, 128
        %1750 = vxpose.xlu0.b32.cont [5/16] 0.0, 128
        %1751 = vxpose.xlu0.b32.cont [6/16] 0.0, 128
        %1752 = vxpose.xlu0.b32.cont [7/16] 0.0, 128
        %1753 = vxpose.xlu0.b32.cont [8/16] 0.0, 128
        %1754 = vxpose.xlu0.b32.cont [9/16] 0.0, 128
        %1755 = vxpose.xlu0.b32.cont [10/16] 0.0, 128
        %1756 = vxpose.xlu0.b32.cont [11/16] 0.0, 128
        %1757 = vxpose.xlu0.b32.cont [12/16] 0.0, 128
        %1758 = vxpose.xlu0.b32.cont [13/16] 0.0, 128
        %1759 = vxpose.xlu0.b32.cont [14/16] 0.0, 128
        %1760 = vxpose.xlu0.b32.cont [15/16] 0.0, 128
        %1761 = vxpose.xlu0.b32.end [16/16] 0.0, 128
        %v1762 = vpop.trf.xlu0
        %v1763 = vpop.trf.xlu0
        %v1764 = vpop.trf.xlu0
        %v1765 = vpop.trf.xlu0
        %v1766 = vpop.trf.xlu0
        %v1767 = vpop.trf.xlu0
        %v1768 = vpop.trf.xlu0
        %v1769 = vpop.trf.xlu0
        %v1770 = vpop.trf.xlu0
        %v1771 = vpop.trf.xlu0
        %v1772 = vpop.trf.xlu0
        %v1773 = vpop.trf.xlu0
        %v1774 = vpop.trf.xlu0
        %v1775 = vpop.trf.xlu0
        %v1776 = vpop.trf.xlu0
        %v1777 = vpop.trf.xlu0
        %v1779 = vsel %vm1083, %v1762, 0
        %v1782 = vsel %vm1083, %v1763, 0
        %v1785 = vsel %vm1083, %v1764, 0
        %v1788 = vsel %vm1083, %v1765, 0
        %1790 = vmatprep.subr.mxu0 0.0
        %1791 = vmatpush1.msra.mxu0 0.0
        %1792 = vmatprep.subr.mxu0 0.0
        %1793 = vmatpush1.msra.mxu0 0.0
        %1794 = vmatprep.subr.mxu0 0.0
        %1795 = vmatpush1.msra.mxu0 0.0
        %1796 = vmatprep.subr.mxu0 0.0
        %1797 = vmatpush1.msra.mxu0 0.0
        %1798 = vmatprep.subr.mxu0 0.0
        %1799 = vmatpush1.msra.mxu0 0.0
        %1800 = vmatprep.subr.mxu0 0.0
        %1801 = vmatpush1.msra.mxu0 0.0
        %1802 = vmatprep.subr.mxu0 0.0
        %1803 = vmatpush1.msra.mxu0 0.0
        %1804 = vmatprep.subr.mxu0 0.0
        %1805 = vmatpush1.msra.mxu0 0.0
        %1806 = vmatprep.subr.mxu0 0.0
        %1807 = vmatpush1.msra.mxu0 0.0
        %1808 = vmatprep.subr.mxu0 0.0
        %1809 = vmatpush1.msra.mxu0 0.0
        %1810 = vmatprep.subr.mxu0 0.0
        %1811 = vmatpush1.msra.mxu0 0.0
        %1812 = vmatprep.subr.mxu0 0.0
        %1813 = vmatpush1.msra.mxu0 0.0
        %1814 = vmatprep.subr.mxu0 0.0
        %1815 = vmatpush1.msra.mxu0 %v1737
        %1816 = vmatprep.subr.mxu0 0.0
        %1817 = vmatpush1.msra.mxu0 %v1736
        %1818 = vmatprep.subr.mxu0 0.0
        %1819 = vmatpush1.msra.mxu0 %v1735
        %1820 = vmatprep.subr.mxu0 0.0
        %1821 = vmatpush1.msra.mxu0 %v1734
        %1822 = vmatprep.subr.mxu0 0.0
        %1823 = vmatpush2.msra.mxu0 0.0
        %1824 = vmatprep.subr.mxu0 0.0
        %1825 = vmatpush2.msra.mxu0 0.0
        %1826 = vmatprep.subr.mxu0 0.0
        %1827 = vmatpush2.msra.mxu0 0.0
        %1828 = vmatprep.subr.mxu0 0.0
        %1829 = vmatpush2.msra.mxu0 0.0
        %1830 = vmatprep.subr.mxu0 0.0
        %1831 = vmatpush2.msra.mxu0 0.0
        %1832 = vmatprep.subr.mxu0 0.0
        %1833 = vmatpush2.msra.mxu0 0.0
        %1834 = vmatprep.subr.mxu0 0.0
        %1835 = vmatpush2.msra.mxu0 0.0
        %1836 = vmatprep.subr.mxu0 0.0
        %1837 = vmatpush2.msra.mxu0 0.0
        %1838 = vmatprep.subr.mxu0 0.0
        %1839 = vmatpush2.msra.mxu0 0.0
        %1840 = vmatprep.subr.mxu0 0.0
        %1841 = vmatpush2.msra.mxu0 0.0
        %1842 = vmatprep.subr.mxu0 0.0
        %1843 = vmatpush2.msra.mxu0 0.0
        %1844 = vmatprep.subr.mxu0 0.0
        %1845 = vmatpush2.msra.mxu0 0.0
        %1846 = vmatprep.subr.mxu0 0.0
        %1847 = vmatpush2.msra.mxu0 0.0
        %1848 = vmatprep.subr.mxu0 0.0
        %1849 = vmatpush2.msra.mxu0 0.0
        %1850 = vmatprep.subr.mxu0 0.0
        %1851 = vmatpush2.msra.mxu0 0.0
        %1852 = vmatprep.subr.mxu0 0.0
        %1853 = vmatpush2.msra.mxu0 0.0
        %1854 = vmatprep.mubr.f32.mxu0 0.0
        %1855 = vmatmul.mubr.f32.gmra.mxu0 %v1779
        %v1856 = vpop.f32.mrf.mxu0
        %v1857 = vadd.f32 0.0, %v1856
        %v1858 = vpop.f32.mrf.mxu0
        %1859 = vmatprep.mubr.f32.mxu0 0.0
        %1860 = vmatmul.mubr.f32.gmra.mxu0 %v1782
        %v1861 = vpop.f32.mrf.mxu0
        %v1862 = vadd.f32 0.0, %v1861
        %v1863 = vpop.f32.mrf.mxu0
        %1864 = vmatprep.mubr.f32.mxu0 0.0
        %1865 = vmatmul.mubr.f32.gmra.mxu0 %v1785
        %v1866 = vpop.f32.mrf.mxu0
        %v1867 = vadd.f32 0.0, %v1866
        %v1868 = vpop.f32.mrf.mxu0
        %1869 = vmatprep.mubr.f32.mxu0 0.0
        %1870 = vmatmul.mubr.f32.gmra.mxu0 %v1788
        %v1871 = vpop.f32.mrf.mxu0
        %v1872 = vadd.f32 0.0, %v1871
        %v1873 = vpop.f32.mrf.mxu0
        %1874 = vdwg.mxu0
        %1875 = vxpose.xlu0.b32.start [1/16] %v1043, 128
        %1876 = vxpose.xlu0.b32.cont [2/16] %v1044, 128
        %1877 = vxpose.xlu0.b32.cont [3/16] %v1045, 128
        %1878 = vxpose.xlu0.b32.cont [4/16] %v1046, 128
        %1879 = vxpose.xlu0.b32.cont [5/16] 0.0, 128
        %1880 = vxpose.xlu0.b32.cont [6/16] 0.0, 128
        %1881 = vxpose.xlu0.b32.cont [7/16] 0.0, 128
        %1882 = vxpose.xlu0.b32.cont [8/16] 0.0, 128
        %1883 = vxpose.xlu0.b32.cont [9/16] 0.0, 128
        %1884 = vxpose.xlu0.b32.cont [10/16] 0.0, 128
        %1885 = vxpose.xlu0.b32.cont [11/16] 0.0, 128
        %1886 = vxpose.xlu0.b32.cont [12/16] 0.0, 128
        %1887 = vxpose.xlu0.b32.cont [13/16] 0.0, 128
        %1888 = vxpose.xlu0.b32.cont [14/16] 0.0, 128
        %1889 = vxpose.xlu0.b32.cont [15/16] 0.0, 128
        %1890 = vxpose.xlu0.b32.end [16/16] 0.0, 128
        %v1891 = vpop.trf.xlu0
        %v1892 = vpop.trf.xlu0
        %v1893 = vpop.trf.xlu0
        %v1894 = vpop.trf.xlu0
        %v1895 = vpop.trf.xlu0
        %v1896 = vpop.trf.xlu0
        %v1897 = vpop.trf.xlu0
        %v1898 = vpop.trf.xlu0
        %v1899 = vpop.trf.xlu0
        %v1900 = vpop.trf.xlu0
        %v1901 = vpop.trf.xlu0
        %v1902 = vpop.trf.xlu0
        %v1903 = vpop.trf.xlu0
        %v1904 = vpop.trf.xlu0
        %v1905 = vpop.trf.xlu0
        %v1906 = vpop.trf.xlu0
        %v1908 = vsel %vm1083, %v1891, 0
        %v1911 = vsel %vm1083, %v1892, 0
        %v1914 = vsel %vm1083, %v1893, 0
        %v1917 = vsel %vm1083, %v1894, 0
        %1919 = vmatprep.subr.mxu0 0.0
        %1920 = vmatpush1.msra.mxu0 0.0
        %1921 = vmatprep.subr.mxu0 0.0
        %1922 = vmatpush1.msra.mxu0 0.0
        %1923 = vmatprep.subr.mxu0 0.0
        %1924 = vmatpush1.msra.mxu0 0.0
        %1925 = vmatprep.subr.mxu0 0.0
        %1926 = vmatpush1.msra.mxu0 0.0
        %1927 = vmatprep.subr.mxu0 0.0
        %1928 = vmatpush1.msra.mxu0 0.0
        %1929 = vmatprep.subr.mxu0 0.0
        %1930 = vmatpush1.msra.mxu0 0.0
        %1931 = vmatprep.subr.mxu0 0.0
        %1932 = vmatpush1.msra.mxu0 0.0
        %1933 = vmatprep.subr.mxu0 0.0
        %1934 = vmatpush1.msra.mxu0 0.0
        %1935 = vmatprep.subr.mxu0 0.0
        %1936 = vmatpush1.msra.mxu0 0.0
        %1937 = vmatprep.subr.mxu0 0.0
        %1938 = vmatpush1.msra.mxu0 0.0
        %1939 = vmatprep.subr.mxu0 0.0
        %1940 = vmatpush1.msra.mxu0 0.0
        %1941 = vmatprep.subr.mxu0 0.0
        %1942 = vmatpush1.msra.mxu0 0.0
        %1943 = vmatprep.subr.mxu0 0.0
        %1944 = vmatpush1.msra.mxu0 %v1513
        %1945 = vmatprep.subr.mxu0 0.0
        %1946 = vmatpush1.msra.mxu0 %v1512
        %1947 = vmatprep.subr.mxu0 0.0
        %1948 = vmatpush1.msra.mxu0 %v1511
        %1949 = vmatprep.subr.mxu0 0.0
        %1950 = vmatpush1.msra.mxu0 %v1510
        %1951 = vmatprep.subr.mxu0 0.0
        %1952 = vmatpush2.msra.mxu0 0.0
        %1953 = vmatprep.subr.mxu0 0.0
        %1954 = vmatpush2.msra.mxu0 0.0
        %1955 = vmatprep.subr.mxu0 0.0
        %1956 = vmatpush2.msra.mxu0 0.0
        %1957 = vmatprep.subr.mxu0 0.0
        %1958 = vmatpush2.msra.mxu0 0.0
        %1959 = vmatprep.subr.mxu0 0.0
        %1960 = vmatpush2.msra.mxu0 0.0
        %1961 = vmatprep.subr.mxu0 0.0
        %1962 = vmatpush2.msra.mxu0 0.0
        %1963 = vmatprep.subr.mxu0 0.0
        %1964 = vmatpush2.msra.mxu0 0.0
        %1965 = vmatprep.subr.mxu0 0.0
        %1966 = vmatpush2.msra.mxu0 0.0
        %1967 = vmatprep.subr.mxu0 0.0
        %1968 = vmatpush2.msra.mxu0 0.0
        %1969 = vmatprep.subr.mxu0 0.0
        %1970 = vmatpush2.msra.mxu0 0.0
        %1971 = vmatprep.subr.mxu0 0.0
        %1972 = vmatpush2.msra.mxu0 0.0
        %1973 = vmatprep.subr.mxu0 0.0
        %1974 = vmatpush2.msra.mxu0 0.0
        %1975 = vmatprep.subr.mxu0 0.0
        %1976 = vmatpush2.msra.mxu0 0.0
        %1977 = vmatprep.subr.mxu0 0.0
        %1978 = vmatpush2.msra.mxu0 0.0
        %1979 = vmatprep.subr.mxu0 0.0
        %1980 = vmatpush2.msra.mxu0 0.0
        %1981 = vmatprep.subr.mxu0 0.0
        %1982 = vmatpush2.msra.mxu0 0.0
        %1983 = vmatprep.mubr.f32.mxu0 0.0
        %1984 = vmatmul.mubr.f32.gmra.mxu0 %v1908
        %v1985 = vpop.f32.mrf.mxu0
        %v1986 = vadd.f32 %v1857, %v1985
        %v1987 = vpop.f32.mrf.mxu0
        %1988 = vmatprep.mubr.f32.mxu0 0.0
        %1989 = vmatmul.mubr.f32.gmra.mxu0 %v1911
        %v1990 = vpop.f32.mrf.mxu0
        %v1991 = vadd.f32 %v1862, %v1990
        %v1992 = vpop.f32.mrf.mxu0
        %1993 = vmatprep.mubr.f32.mxu0 0.0
        %1994 = vmatmul.mubr.f32.gmra.mxu0 %v1914
        %v1995 = vpop.f32.mrf.mxu0
        %v1996 = vadd.f32 %v1867, %v1995
        %v1997 = vpop.f32.mrf.mxu0
        %1998 = vmatprep.mubr.f32.mxu0 0.0
        %1999 = vmatmul.mubr.f32.gmra.mxu0 %v1917
        %v2000 = vpop.f32.mrf.mxu0
        %v2001 = vadd.f32 %v1872, %v2000
        %v2002 = vpop.f32.mrf.mxu0
        %2003 = vdwg.mxu0
        %v2004 = vadd.f32 %v1742, %v1986
        %v2005 = vadd.f32 %v1743, %v1991
        %v2006 = vadd.f32 %v1744, %v1996
        %v2007 = vadd.f32 %v1745, %v2001
        %2008 = vst [vmem:[#allocation4] sm:$0xff] %v2004
        %2009 = vst [vmem:[#allocation4 + $0x8] sm:$0xff] %v2005
        %2010 = vst [vmem:[#allocation4 + $0x10] sm:$0xff] %v2006
        %2011 = vst [vmem:[#allocation4 + $0x18] sm:$0xff] %v2007
        %p2012 = scmp.eq.s32.totalorder %s43, 1
        // Predicated region
        $region133: #{tpu_custom_call.1} parent=95 // pred_check
          %p2013 = pneg %p2012
        $region134: #{tpu_custom_call.1} parent=95 // pred_check_branch
          %2015 = sbr.rel (%p2013) target = $region136
        $region135: #{tpu_custom_call.1} parent=95 // pred_region
          %v2016 = vld [vmem:[#allocation4] sm:$0xff]
          %v2017 = vld [vmem:[#allocation4 + $0x8] sm:$0xff]
          %v2018 = vld [vmem:[#allocation4 + $0x10] sm:$0xff]
          %v2019 = vld [vmem:[#allocation4 + $0x18] sm:$0xff]
          %v2020 = vld [vmem:[%s4] sm:$0xff]
          %v2021 = vld [vmem:[%s4 + $0x8] sm:$0xff]
          %v2022 = vld [vmem:[%s4 + $0x10] sm:$0xff]
          %v2023 = vld [vmem:[%s4 + $0x18] sm:$0xff]
          %2025 = vset.pattern.permute.xlu0 0
          %2026 = vperm.xlu0 %2025, %v2020
          %v2027 = vpop.permute.xlu0 %2026
          %2030 = vset.pattern.permute.xlu0 0
          %2031 = vperm.xlu0 %2030, %v2021
          %v2032 = vpop.permute.xlu0 %2031
          %2035 = vset.pattern.permute.xlu0 0
          %2036 = vperm.xlu0 %2035, %v2022
          %v2037 = vpop.permute.xlu0 %2036
          %2040 = vset.pattern.permute.xlu0 0
          %2041 = vperm.xlu0 %2040, %v2023
          %v2042 = vpop.permute.xlu0 %2041
          %v2044 = vmul.f32 %v2016, %v2027
          %v2045 = vmul.f32 %v2017, %v2032
          %v2046 = vmul.f32 %v2018, %v2037
          %v2047 = vmul.f32 %v2019, %v2042
          %v2048 = vld [vmem:[#allocation16] sm:$0xff]
          %v2049 = vld [vmem:[#allocation16 + $0x8] sm:$0xff]
          %v2050 = vld [vmem:[#allocation16 + $0x10] sm:$0xff]
          %v2051 = vld [vmem:[#allocation16 + $0x18] sm:$0xff]
          %v2052 = vld [vmem:[#allocation16 + $0x20] sm:$0xff]
          %v2053 = vld [vmem:[#allocation16 + $0x28] sm:$0xff]
          %v2054 = vld [vmem:[#allocation16 + $0x30] sm:$0xff]
          %v2055 = vld [vmem:[#allocation16 + $0x38] sm:$0xff]
          %v2056 = vld [vmem:[#allocation16 + $0x40] sm:$0xff]
          %v2057 = vld [vmem:[#allocation16 + $0x48] sm:$0xff]
          %v2058 = vld [vmem:[#allocation16 + $0x50] sm:$0xff]
          %v2059 = vld [vmem:[#allocation16 + $0x58] sm:$0xff]
          %v2060 = vld [vmem:[#allocation16 + $0x60] sm:$0xff]
          %v2061 = vld [vmem:[#allocation16 + $0x68] sm:$0xff]
          %v2062 = vld [vmem:[#allocation16 + $0x70] sm:$0xff]
          %v2063 = vld [vmem:[#allocation16 + $0x78] sm:$0xff]
          %v2064 = vld [vmem:[%s16] sm:$0x1]
          %v2066 = vlaneseq
          %v2067 = vshrl.u32 %v2066, 7
          %v2068 = vsub.s32 0, %v2067
          %v2069 = vrot.slane %v2064, %v2068
          %2071 = vmatprep.subr.mxu0 0.0
          %2072 = vmatpush1.msra.mxu0 %v2063
          %2073 = vmatprep.subr.mxu0 0.0
          %2074 = vmatpush1.msra.mxu0 %v2062
          %2075 = vmatprep.subr.mxu0 0.0
          %2076 = vmatpush1.msra.mxu0 %v2061
          %2077 = vmatprep.subr.mxu0 0.0
          %2078 = vmatpush1.msra.mxu0 %v2060
          %2079 = vmatprep.subr.mxu0 0.0
          %2080 = vmatpush1.msra.mxu0 %v2059
          %2081 = vmatprep.subr.mxu0 0.0
          %2082 = vmatpush1.msra.mxu0 %v2058
          %2083 = vmatprep.subr.mxu0 0.0
          %2084 = vmatpush1.msra.mxu0 %v2057
          %2085 = vmatprep.subr.mxu0 0.0
          %2086 = vmatpush1.msra.mxu0 %v2056
          %2087 = vmatprep.subr.mxu0 0.0
          %2088 = vmatpush1.msra.mxu0 %v2055
          %2089 = vmatprep.subr.mxu0 0.0
          %2090 = vmatpush1.msra.mxu0 %v2054
          %2091 = vmatprep.subr.mxu0 0.0
          %2092 = vmatpush1.msra.mxu0 %v2053
          %2093 = vmatprep.subr.mxu0 0.0
          %2094 = vmatpush1.msra.mxu0 %v2052
          %2095 = vmatprep.subr.mxu0 0.0
          %2096 = vmatpush1.msra.mxu0 %v2051
          %2097 = vmatprep.subr.mxu0 0.0
          %2098 = vmatpush1.msra.mxu0 %v2050
          %2099 = vmatprep.subr.mxu0 0.0
          %2100 = vmatpush1.msra.mxu0 %v2049
          %2101 = vmatprep.subr.mxu0 0.0
          %2102 = vmatpush1.msra.mxu0 %v2048
          %2103 = vmatprep.subr.mxu0 0.0
          %2104 = vmatpush2.msra.mxu0 0.0
          %2105 = vmatprep.subr.mxu0 0.0
          %2106 = vmatpush2.msra.mxu0 0.0
          %2107 = vmatprep.subr.mxu0 0.0
          %2108 = vmatpush2.msra.mxu0 0.0
          %2109 = vmatprep.subr.mxu0 0.0
          %2110 = vmatpush2.msra.mxu0 0.0
          %2111 = vmatprep.subr.mxu0 0.0
          %2112 = vmatpush2.msra.mxu0 0.0
          %2113 = vmatprep.subr.mxu0 0.0
          %2114 = vmatpush2.msra.mxu0 0.0
          %2115 = vmatprep.subr.mxu0 0.0
          %2116 = vmatpush2.msra.mxu0 0.0
          %2117 = vmatprep.subr.mxu0 0.0
          %2118 = vmatpush2.msra.mxu0 0.0
          %2119 = vmatprep.subr.mxu0 0.0
          %2120 = vmatpush2.msra.mxu0 0.0
          %2121 = vmatprep.subr.mxu0 0.0
          %2122 = vmatpush2.msra.mxu0 0.0
          %2123 = vmatprep.subr.mxu0 0.0
          %2124 = vmatpush2.msra.mxu0 0.0
          %2125 = vmatprep.subr.mxu0 0.0
          %2126 = vmatpush2.msra.mxu0 0.0
          %2127 = vmatprep.subr.mxu0 0.0
          %2128 = vmatpush2.msra.mxu0 0.0
          %2129 = vmatprep.subr.mxu0 0.0
          %2130 = vmatpush2.msra.mxu0 0.0
          %2131 = vmatprep.subr.mxu0 0.0
          %2132 = vmatpush2.msra.mxu0 0.0
          %2133 = vmatprep.subr.mxu0 0.0
          %2134 = vmatpush2.msra.mxu0 0.0
          %2135 = vmatprep.mubr.f32.mxu0 0.0
          %2136 = vmatmul.mubr.f32.gmra.mxu0 %v2044
          %v2137 = vpop.f32.mrf.mxu0
          %v2138 = vadd.f32 %v2069, %v2137
          %v2139 = vpop.f32.mrf.mxu0
          %2140 = vmatprep.mubr.f32.mxu0 0.0
          %2141 = vmatmul.mubr.f32.gmra.mxu0 %v2045
          %v2142 = vpop.f32.mrf.mxu0
          %v2143 = vadd.f32 %v2069, %v2142
          %v2144 = vpop.f32.mrf.mxu0
          %2145 = vmatprep.mubr.f32.mxu0 0.0
          %2146 = vmatmul.mubr.f32.gmra.mxu0 %v2046
          %v2147 = vpop.f32.mrf.mxu0
          %v2148 = vadd.f32 %v2069, %v2147
          %v2149 = vpop.f32.mrf.mxu0
          %2150 = vmatprep.mubr.f32.mxu0 0.0
          %2151 = vmatmul.mubr.f32.gmra.mxu0 %v2047
          %v2152 = vpop.f32.mrf.mxu0
          %v2153 = vadd.f32 %v2069, %v2152
          %v2154 = vpop.f32.mrf.mxu0
          %2155 = vdwg.mxu0
          %v2156 = vmax.f32 %v2138, 0.0
          %v2157 = vmax.f32 %v2143, 0.0
          %v2158 = vmax.f32 %v2148, 0.0
          %v2159 = vmax.f32 %v2153, 0.0
          %v2160 = vld [vmem:[#allocation17] sm:$0xff]
          %v2161 = vld [vmem:[#allocation17 + $0x8] sm:$0xff]
          %v2162 = vld [vmem:[#allocation17 + $0x10] sm:$0xff]
          %v2163 = vld [vmem:[#allocation17 + $0x18] sm:$0xff]
          %v2164 = vld [vmem:[#allocation17 + $0x20] sm:$0xff]
          %v2165 = vld [vmem:[#allocation17 + $0x28] sm:$0xff]
          %v2166 = vld [vmem:[#allocation17 + $0x30] sm:$0xff]
          %v2167 = vld [vmem:[#allocation17 + $0x38] sm:$0xff]
          %v2168 = vld [vmem:[#allocation17 + $0x40] sm:$0xff]
          %v2169 = vld [vmem:[#allocation17 + $0x48] sm:$0xff]
          %v2170 = vld [vmem:[#allocation17 + $0x50] sm:$0xff]
          %v2171 = vld [vmem:[#allocation17 + $0x58] sm:$0xff]
          %v2172 = vld [vmem:[#allocation17 + $0x60] sm:$0xff]
          %v2173 = vld [vmem:[#allocation17 + $0x68] sm:$0xff]
          %v2174 = vld [vmem:[#allocation17 + $0x70] sm:$0xff]
          %v2175 = vld [vmem:[#allocation17 + $0x78] sm:$0xff]
          %v2176 = vld [vmem:[%s18] sm:$0x1]
          %v2178 = vlaneseq
          %v2179 = vshrl.u32 %v2178, 7
          %v2180 = vsub.s32 0, %v2179
          %v2181 = vrot.slane %v2176, %v2180
          %2183 = vmatprep.subr.mxu0 0.0
          %2184 = vmatpush1.msra.mxu0 %v2175
          %2185 = vmatprep.subr.mxu0 0.0
          %2186 = vmatpush1.msra.mxu0 %v2174
          %2187 = vmatprep.subr.mxu0 0.0
          %2188 = vmatpush1.msra.mxu0 %v2173
          %2189 = vmatprep.subr.mxu0 0.0
          %2190 = vmatpush1.msra.mxu0 %v2172
          %2191 = vmatprep.subr.mxu0 0.0
          %2192 = vmatpush1.msra.mxu0 %v2171
          %2193 = vmatprep.subr.mxu0 0.0
          %2194 = vmatpush1.msra.mxu0 %v2170
          %2195 = vmatprep.subr.mxu0 0.0
          %2196 = vmatpush1.msra.mxu0 %v2169
          %2197 = vmatprep.subr.mxu0 0.0
          %2198 = vmatpush1.msra.mxu0 %v2168
          %2199 = vmatprep.subr.mxu0 0.0
          %2200 = vmatpush1.msra.mxu0 %v2167
          %2201 = vmatprep.subr.mxu0 0.0
          %2202 = vmatpush1.msra.mxu0 %v2166
          %2203 = vmatprep.subr.mxu0 0.0
          %2204 = vmatpush1.msra.mxu0 %v2165
          %2205 = vmatprep.subr.mxu0 0.0
          %2206 = vmatpush1.msra.mxu0 %v2164
          %2207 = vmatprep.subr.mxu0 0.0
          %2208 = vmatpush1.msra.mxu0 %v2163
          %2209 = vmatprep.subr.mxu0 0.0
          %2210 = vmatpush1.msra.mxu0 %v2162
          %2211 = vmatprep.subr.mxu0 0.0
          %2212 = vmatpush1.msra.mxu0 %v2161
          %2213 = vmatprep.subr.mxu0 0.0
          %2214 = vmatpush1.msra.mxu0 %v2160
          %2215 = vmatprep.subr.mxu0 0.0
          %2216 = vmatpush2.msra.mxu0 0.0
          %2217 = vmatprep.subr.mxu0 0.0
          %2218 = vmatpush2.msra.mxu0 0.0
          %2219 = vmatprep.subr.mxu0 0.0
          %2220 = vmatpush2.msra.mxu0 0.0
          %2221 = vmatprep.subr.mxu0 0.0
          %2222 = vmatpush2.msra.mxu0 0.0
          %2223 = vmatprep.subr.mxu0 0.0
          %2224 = vmatpush2.msra.mxu0 0.0
          %2225 = vmatprep.subr.mxu0 0.0
          %2226 = vmatpush2.msra.mxu0 0.0
          %2227 = vmatprep.subr.mxu0 0.0
          %2228 = vmatpush2.msra.mxu0 0.0
          %2229 = vmatprep.subr.mxu0 0.0
          %2230 = vmatpush2.msra.mxu0 0.0
          %2231 = vmatprep.subr.mxu0 0.0
          %2232 = vmatpush2.msra.mxu0 0.0
          %2233 = vmatprep.subr.mxu0 0.0
          %2234 = vmatpush2.msra.mxu0 0.0
          %2235 = vmatprep.subr.mxu0 0.0
          %2236 = vmatpush2.msra.mxu0 0.0
          %2237 = vmatprep.subr.mxu0 0.0
          %2238 = vmatpush2.msra.mxu0 0.0
          %2239 = vmatprep.subr.mxu0 0.0
          %2240 = vmatpush2.msra.mxu0 0.0
          %2241 = vmatprep.subr.mxu0 0.0
          %2242 = vmatpush2.msra.mxu0 0.0
          %2243 = vmatprep.subr.mxu0 0.0
          %2244 = vmatpush2.msra.mxu0 0.0
          %2245 = vmatprep.subr.mxu0 0.0
          %2246 = vmatpush2.msra.mxu0 0.0
          %2247 = vmatprep.mubr.f32.mxu0 0.0
          %2248 = vmatmul.mubr.f32.gmra.mxu0 %v2156
          %v2249 = vpop.f32.mrf.mxu0
          %v2250 = vadd.f32 %v2181, %v2249
          %v2251 = vpop.f32.mrf.mxu0
          %2252 = vmatprep.mubr.f32.mxu0 0.0
          %2253 = vmatmul.mubr.f32.gmra.mxu0 %v2157
          %v2254 = vpop.f32.mrf.mxu0
          %v2255 = vadd.f32 %v2181, %v2254
          %v2256 = vpop.f32.mrf.mxu0
          %2257 = vmatprep.mubr.f32.mxu0 0.0
          %2258 = vmatmul.mubr.f32.gmra.mxu0 %v2158
          %v2259 = vpop.f32.mrf.mxu0
          %v2260 = vadd.f32 %v2181, %v2259
          %v2261 = vpop.f32.mrf.mxu0
          %2262 = vmatprep.mubr.f32.mxu0 0.0
          %2263 = vmatmul.mubr.f32.gmra.mxu0 %v2159
          %v2264 = vpop.f32.mrf.mxu0
          %v2265 = vadd.f32 %v2181, %v2264
          %v2266 = vpop.f32.mrf.mxu0
          %2267 = vdwg.mxu0
          %v2268 = vmax.f32 %v2250, 0.0
          %v2269 = vmax.f32 %v2255, 0.0
          %v2270 = vmax.f32 %v2260, 0.0
          %v2271 = vmax.f32 %v2265, 0.0
          %2272 = vst [vmem:[#allocation19] sm:$0xff] %v2268
          %2273 = vst [vmem:[#allocation19 + $0x8] sm:$0xff] %v2269
          %2274 = vst [vmem:[#allocation19 + $0x10] sm:$0xff] %v2270
          %2275 = vst [vmem:[#allocation19 + $0x18] sm:$0xff] %v2271
        $region136: #{tpu_custom_call.1} parent=95 // pred_fallthru
          _
        %s2276 = sand.u32 %s486, 1
        %s2277 = scalar_lea.sflag [#allocation21], %s2276
        %s2278 = sand.u32 %s486, 1
        %s2279 = smul.addr %s2278, 32
        %s2280 = scalar_lea.vmem [#allocation20], %s2279
        // Predicated region
        $region137: #{tpu_custom_call.1} parent=95 // pred_check
          %p2281 = pneg %p470
        $region138: #{tpu_custom_call.1} parent=95 // pred_check_branch
          %2283 = sbr.rel (%p2281) target = $region140
        $region139: #{tpu_custom_call.1} parent=95 // pred_region
          %s2285 = ssub.s32 512, 512
          %2286 = vsyncadd [#allocation7], %s2285
          %s2287 = sshll.u32 [#allocation19], 4
          %s2288 = int_to_ptr.vmem [resolvable:$true] %s2287
          %2293 = dma.vmem_to_hbm [thread:$0]  %s2288, 512, %s19, [#allocation7], 128, 128, 8
        $region140: #{tpu_custom_call.1} parent=95 // pred_fallthru
          _
        // Predicated region
        $region141: #{tpu_custom_call.1} parent=95 // pred_check
          %p2294 = pneg %p496
        $region142: #{tpu_custom_call.1} parent=95 // pred_check_branch
          %2296 = sbr.rel (%p2294) target = $region144
        $region143: #{tpu_custom_call.1} parent=95 // pred_region
          %s2297 = smul.u32 4, %s43
          %s2299 = ssub.s32 512, 512
          %2300 = vsyncadd %s2277, %s2299
          %s2301 = smul.addr %s2297, 128
          %s2302 = scalar_lea.hbm %s20, %s2301
          %s2303 = sshll.u32 %s2280, 4
          %s2304 = int_to_ptr.vmem [resolvable:$true] %s2303
          %2309 = dma.vmem_to_hbm [thread:$0]  %s2304, 512, %s2302, %s2277, 128, 128, 8
        $region144: #{tpu_custom_call.1} parent=95 // pred_fallthru
          _
        // Predicated region
        $region145: #{tpu_custom_call.1} parent=95 // pred_check
          %p2310 = pneg %p470
        $region146: #{tpu_custom_call.1} parent=95 // pred_check_branch
          %2312 = sbr.rel (%p2310) target = $region148
        $region147: #{tpu_custom_call.1} parent=95 // pred_region
          %2313 = dma.done [#allocation7], 512
        $region148: #{tpu_custom_call.1} parent=95 // pred_fallthru
          _
      $region96: #{tpu_custom_call.1} parent=5 // pred_fallthru
        _
      %p2314 = scmp.le.s32.totalorder 2, %s38
      // Predicated region
      $region149: #{tpu_custom_call.1} parent=5 // pred_check
        %p2315 = pneg %p2314
      $region150: #{tpu_custom_call.1} parent=5 // pred_check_branch
        %2317 = sbr.rel (%p2315) target = $region152
      $region151: #{tpu_custom_call.1} parent=5 // pred_region
        %s2318 = ssub.s32 %s38, 2
        // Predicated region
        $region153: #{tpu_custom_call.1} parent=151 // pred_check
          %p2319 = pneg %p502
        $region154: #{tpu_custom_call.1} parent=151 // pred_check_branch
          %2321 = sbr.rel (%p2319) target = $region156
        $region155: #{tpu_custom_call.1} parent=151 // pred_region
          %s2322 = sand.u32 %s487, 1
          %s2323 = scalar_lea.sflag [#allocation21], %s2322
          %s2324 = sand.u32 %s487, 1
          %s2325 = smul.addr %s2324, 32
          %s2326 = scalar_lea.vmem [#allocation20], %s2325
          %2327 = dma.done %s2323, 512
        $region156: #{tpu_custom_call.1} parent=151 // pred_fallthru
          _
      $region152: #{tpu_custom_call.1} parent=5 // pred_fallthru
        _
    $region6: #{tpu_custom_call.1} parent=1 // loop_footer
      %s42 = sadd.s32 1, %s38
    $region7: #{tpu_custom_call.1} parent=1 // loop_footer_branch
      %37 = sbr.rel target = $region3
    $region8: #{tpu_custom_call.1} parent=1 // loop_exit
      _
    %2328 = vsyncpa [#allocation6], 1
    %s2329 = scalar_lea.sflag [#allocation6], 1
    %2330 = vsyncpa %s2329, 1
    %2331 = vsyncpa [#allocation9], 1
    %2332 = vsyncpa [#allocation12], 1
    %2333 = vsyncpa [#allocation15], 1
    %2334 = vsyncpa [#allocation18], 1
    %2335 = vsyncpa [#allocation7], 1
    %s2336 = scalar_lea.sflag [#allocation7], 1
    %2337 = vsyncpa %s2336, 1
    %2338 = vsyncpa [#allocation21], 1
    %s2339 = scalar_lea.sflag [#allocation21], 1
    %2340 = vsyncpa %s2339, 1

</llo_original>
